<compile_context>
chip_gen: v5e
topology: v5e:2x2
jax: 0.10.0
libtpu: 0.0.40
codegen_flags: <defaults>
</compile_context>

<pallas_src>
import jax
import jax.numpy as jnp
from jax.experimental import pallas as pl
from jax.experimental.pallas import tpu as pltpu


def _round_up(x, m):
    return ((x + m - 1) // m) * m


def _char_rnn_kernel(x_ref, w_ref, b_ref, wo_ref, bo_ref, out_ref, hs_ref):
    # x_ref:  (T, B, P)   time-major, lane-padded embedded input
    # w_ref:  (2P, 4P)    fused [w_ih; w_hh], each gate padded to P lanes
    # b_ref:  (1, 4P)     combined gate bias (lane-padded)
    # wo_ref: (P, Vp)     output projection (lane-padded)
    # bo_ref: (1, Vp)
    # out_ref:(T*B, Vp)   logits, time-major rows (row = t*B + b)
    # hs_ref: (T*B, P)    VMEM scratch holding all hidden states
    T, B, P = x_ref.shape

    w = w_ref[...]          # keep resident; reused every step
    b = b_ref[...]

    def step(t, carry):
        h, c = carry                                      # (B, P) each
        x_t = x_ref[t]                                    # (B, P)
        xh = jnp.concatenate([x_t, h], axis=-1)           # (B, 2P) lane concat, no shuffle
        # single fused matmul for all four gates
        gates = jnp.dot(xh, w, preferred_element_type=jnp.float32) + b   # (B, 4P)
        # 128-aligned full-tile gate slices (PyTorch order i|f|g|o); padding lanes stay 0
        i_g = jax.nn.sigmoid(gates[:, 0 * P:1 * P])
        f_g = jax.nn.sigmoid(gates[:, 1 * P:2 * P])
        g_g = jnp.tanh(gates[:, 2 * P:3 * P])
        o_g = jax.nn.sigmoid(gates[:, 3 * P:4 * P])
        c_new = f_g * c + i_g * g_g
        h_new = o_g * jnp.tanh(c_new)
        hs_ref[pl.ds(t * B, B), :] = h_new                # rows t*B .. t*B+B-1
        return h_new, c_new

    zero = jnp.zeros((B, P), jnp.float32)
    jax.lax.fori_loop(0, T, step, (zero, zero), unroll=True)

    # Hoisted vocab projection: one well-shaped matmul + one unmasked lane-dense store.
    logits = (jnp.dot(hs_ref[...], wo_ref[...], preferred_element_type=jnp.float32)
              + bo_ref[...])
    out_ref[...] = logits.astype(out_ref.dtype)


@jax.jit
def char_rnn_forward(token_ids, packed):
    """Forward pass matching CharRNNGenerator.forward.

    token_ids: (B, T) int32
    packed:    dict from pack_params()
    returns:   (B, T, V) float32 logits (batch_first)
    """
    emb_pad = packed["emb_pad"]        # (V, P)
    w_cat = packed["w_cat"]            # (2P, 4P)
    b_pad = packed["b_pad"]            # (1, 4P)
    w_out_pad = packed["w_out_pad"]    # (P, Vp)
    b_out_pad = packed["b_out_pad"]    # (1, Vp)

    B, T = token_ids.shape
    V, P = emb_pad.shape
    Vp = w_out_pad.shape[1]

    # Gather directly in time-major order: no standalone input transpose.
    x_tm = emb_pad[token_ids.T]        # (T, B, P)

    out_pad = pl.pallas_call(
        _char_rnn_kernel,
        out_shape=jax.ShapeDtypeStruct((T * B, Vp), jnp.float32),
        grid_spec=pltpu.PrefetchScalarGridSpec(
            num_scalar_prefetch=0,
            grid=(1,),
            in_specs=[
                pl.BlockSpec((T, B, P), lambda i: (0, 0, 0)),       # x (whole sequence)
                pl.BlockSpec((2 * P, 4 * P), lambda i: (0, 0)),     # fused gate weight
                pl.BlockSpec((1, 4 * P), lambda i: (0, 0)),         # gate bias
                pl.BlockSpec((P, Vp), lambda i: (0, 0)),            # output proj weight
                pl.BlockSpec((1, Vp), lambda i: (0, 0)),            # output proj bias
            ],
            out_specs=pl.BlockSpec((T * B, Vp), lambda i: (0, 0)),
            scratch_shapes=[pltpu.VMEM((T * B, P), jnp.float32)],   # hidden-state slab
        ),
        compiler_params=pltpu.CompilerParams(
            dimension_semantics=("arbitrary",),   # single sequential invocation
        ),
    )(x_tm, w_cat, b_pad, w_out_pad, b_out_pad)

    # Single layout change on the way out: (T*B, Vp) -> (B, T, V) batch_first.
    return jnp.transpose(out_pad.reshape(T, B, Vp), (1, 0, 2))[:, :, :V]


def pack_params(params):
    """Pre-fuse / lane-pad parameters for the kernel (done once, outside the hot path)."""
    emb = params["embedding"]          # (V, E)
    w_ih = params["w_ih"]              # (E, 4E)
    w_hh = params["w_hh"]              # (E, 4E)
    b = params["b"]                    # (1, 4E)
    w_out = params["w_out"]            # (E, V)
    b_out = params["b_out"]            # (1, V)

    V, E = emb.shape
    assert w_out.shape[0] == E, "kernel assumes hidden_size == emb_size (as in the module)"
    P = _round_up(E, 128)              # per-gate / hidden lane width
    Vp = _round_up(V, 128)             # padded vocab lane width

    emb_pad = jnp.zeros((V, P), jnp.float32).at[:, :E].set(emb)

    # Fused gate weight: rows [0:E] = w_ih, rows [P:P+E] = w_hh; gate k occupies
    # lanes [k*P, k*P+E). Padding lanes have zero weight and zero bias, so padded
    # gate pre-activations are 0 and padded h/c lanes stay exactly 0.
    w_cat = jnp.zeros((2 * P, 4 * P), jnp.float32)
    b_pad = jnp.zeros((1, 4 * P), jnp.float32)
    for k in range(4):
        w_cat = w_cat.at[0:E, k * P:k * P + E].set(w_ih[:, k * E:(k + 1) * E])
        w_cat = w_cat.at[P:P + E, k * P:k * P + E].set(w_hh[:, k * E:(k + 1) * E])
        b_pad = b_pad.at[0, k * P:k * P + E].set(b[0, k * E:(k + 1) * E])

    w_out_pad = jnp.zeros((P, Vp), jnp.float32).at[:E, :V].set(w_out)
    b_out_pad = jnp.zeros((1, Vp), jnp.float32).at[0, :V].set(b_out[0])

    return {
        "emb_pad": emb_pad,
        "w_cat": w_cat,
        "b_pad": b_pad,
        "w_out_pad": w_out_pad,
        "b_out_pad": b_out_pad,
    }


def _reference_forward(token_ids, params):
    """Pure-JAX reference (PyTorch LSTM semantics, gate order i|f|g|o)."""
    emb = params["embedding"]
    w_ih, w_hh, b = params["w_ih"], params["w_hh"], params["b"]
    w_out, b_out = params["w_out"], params["b_out"]
    B, T = token_ids.shape
    E = emb.shape[1]
    x = emb[token_ids]                           # (B, T, E)

    def step(carry, xt):
        h, c = carry
        gates = xt @ w_ih + h @ w_hh + b[0]
        i = jax.nn.sigmoid(gates[:, 0 * E:1 * E])
        f = jax.nn.sigmoid(gates[:, 1 * E:2 * E])
        g = jnp.tanh(gates[:, 2 * E:3 * E])
        o = jax.nn.sigmoid(gates[:, 3 * E:4 * E])
        c = f * c + i * g
        h = o * jnp.tanh(c)
        return (h, c), h

    h0 = jnp.zeros((B, E), jnp.float32)
    c0 = jnp.zeros((B, E), jnp.float32)
    _, hs = jax.lax.scan(step, (h0, c0), jnp.transpose(x, (1, 0, 2)))  # (T, B, E)
    logits = hs @ w_out + b_out[0]               # (T, B, V)
    return jnp.transpose(logits, (1, 0, 2))


def make_params(key, vocab_size, emb_size):
    """Deterministic synthetic parameters with the shapes nn.Embedding/nn.LSTM/nn.Linear imply."""
    ks = jax.random.split(key, 7)
    V, E = vocab_size, emb_size
    scale = 1.0 / jnp.sqrt(E)
    embedding = jax.random.normal(ks[0], (V, E), jnp.float32)
    # PyTorch stores weight_ih_l0: (4E, E); we keep the transposed (E, 4E) layout.
    w_ih = jax.random.uniform(ks[1], (E, 4 * E), jnp.float32, -scale, scale)
    w_hh = jax.random.uniform(ks[2], (E, 4 * E), jnp.float32, -scale, scale)
    b_ih = jax.random.uniform(ks[3], (4 * E,), jnp.float32, -scale, scale)
    b_hh = jax.random.uniform(ks[4], (4 * E,), jnp.float32, -scale, scale)
    w_out = jax.random.uniform(ks[5], (E, V), jnp.float32, -scale, scale)
    b_out = jax.random.uniform(ks[6], (V,), jnp.float32, -scale, scale)
    return {
        "embedding": embedding,
        "w_ih": w_ih,
        "w_hh": w_hh,
        "b": (b_ih + b_hh)[None, :],     # (1, 4E)
        "w_out": w_out,
        "b_out": b_out[None, :],         # (1, V)
    }


if __name__ == "__main__":
    VOCAB = 16     # vocab_size = input_size = output_size
    EMB = 32       # emb_size (LSTM hidden size == emb_size)
    B, T = 2, 8    # batch, sequence length

    key = jax.random.PRNGKey(0)
    k_par, k_ids = jax.random.split(key)
    params = make_params(k_par, VOCAB, EMB)
    packed = pack_params(params)
    token_ids = jax.random.randint(k_ids, (B, T), 0, VOCAB, dtype=jnp.int32)

    logits = char_rnn_forward(token_ids, packed)
    jax.block_until_ready(logits)

    ref = _reference_forward(token_ids, params)
    assert logits.shape == (B, T, VOCAB)
    assert jnp.allclose(logits, ref, atol=1e-4, rtol=1e-4), "mismatch vs pure-JAX reference"

    # TODO(synk): decode() (autoregressive Categorical sampling loop) is host-side control
    # flow around forward(); not part of the kernel.
    print("KERNEL_OK")
</pallas_src>

<mosaic_0001>
module attributes {stable_mosaic.version = 11 : i64} {
  func.func @_char_rnn_kernel(%arg0: i32, %arg1: memref<8x2x128xf32, #tpu.memory_space<vmem>>, %arg2: memref<256x512xf32, #tpu.memory_space<vmem>>, %arg3: memref<1x512xf32, #tpu.memory_space<vmem>>, %arg4: memref<128x128xf32, #tpu.memory_space<vmem>>, %arg5: memref<1x128xf32, #tpu.memory_space<vmem>>, %arg6: memref<16x128xf32, #tpu.memory_space<vmem>>, %arg7: memref<16x128xf32, #tpu.memory_space<vmem>>) attributes {dimension_semantics = [#tpu.dimension_semantics<arbitrary>], iteration_bounds = array<i64: 1>, scalar_prefetch = 0 : i64, scratch_operands = 1 : i64, tpu.core_type = #tpu.core_type<tc>, window_params = [{pipeline_mode = #tpu.pipeline_mode<synchronous>, transform_indices = @transform_0, window_bounds = array<i64: 8, 2, 128>}, {pipeline_mode = #tpu.pipeline_mode<synchronous>, transform_indices = @transform_1, window_bounds = array<i64: 256, 512>}, {pipeline_mode = #tpu.pipeline_mode<synchronous>, transform_indices = @transform_2, window_bounds = array<i64: 1, 512>}, {pipeline_mode = #tpu.pipeline_mode<synchronous>, transform_indices = @transform_3, window_bounds = array<i64: 128, 128>}, {pipeline_mode = #tpu.pipeline_mode<synchronous>, transform_indices = @transform_4, window_bounds = array<i64: 1, 128>}, {pipeline_mode = #tpu.pipeline_mode<synchronous>, transform_indices = @transform_5, window_bounds = array<i64: 16, 128>}]} {
    %c0 = arith.constant 0 : index
    %c0_0 = arith.constant 0 : index
    %0 = vector.load %arg2[%c0, %c0_0] : memref<256x512xf32, #tpu.memory_space<vmem>>, vector<256x512xf32>
    %c0_1 = arith.constant 0 : index
    %c0_2 = arith.constant 0 : index
    %1 = vector.load %arg3[%c0_1, %c0_2] : memref<1x512xf32, #tpu.memory_space<vmem>>, vector<1x512xf32>
    %cst = arith.constant 0.000000e+00 : f32
    %2 = vector.broadcast %cst : f32 to vector<2x128xf32>
    %c0_i32 = arith.constant 0 : i32
    %3 = arith.index_cast %c0_i32 : i32 to index
    %c0_3 = arith.constant 0 : index
    %c0_4 = arith.constant 0 : index
    %4 = vector.load %arg1[%3, %c0_3, %c0_4] : memref<8x2x128xf32, #tpu.memory_space<vmem>>, vector<1x2x128xf32>
    %5 = vector.shape_cast %4 : vector<1x2x128xf32> to vector<2x128xf32>
    %6 = tpu.concatenate %5, %2 in 1 : vector<2x128xf32>, vector<2x128xf32> -> vector<2x256xf32>
    %cst_5 = arith.constant dense<0.000000e+00> : vector<2x512xf32>
    %7 = tpu.matmul %6, %0, %cst_5 {dimension_numbers = #tpu.dot_dimension_numbers<[1], [0], [0], [1], [0, 0, 1, 1], [], []>} : vector<2x256xf32>, vector<256x512xf32>, vector<2x512xf32> -> vector<2x512xf32>
    %8 = vector.broadcast %1 : vector<1x512xf32> to vector<2x512xf32>
    %9 = arith.addf %7, %8 : vector<2x512xf32>
    %10 = vector.extract_strided_slice %9 {offsets = [0, 0], sizes = [2, 128], strides = [1, 1]} : vector<2x512xf32> to vector<2x128xf32>
    %11 = arith.negf %10 : vector<2x128xf32>
    %12 = math.exp %11 : vector<2x128xf32>
    %cst_6 = arith.constant 1.000000e+00 : f32
    %13 = vector.broadcast %cst_6 : f32 to vector<2x128xf32>
    %14 = arith.addf %13, %12 : vector<2x128xf32>
    %15 = arith.divf %13, %14 : vector<2x128xf32>
    %16 = vector.extract_strided_slice %9 {offsets = [0, 128], sizes = [2, 128], strides = [1, 1]} : vector<2x512xf32> to vector<2x128xf32>
    %17 = arith.negf %16 : vector<2x128xf32>
    %18 = math.exp %17 : vector<2x128xf32>
    %cst_7 = arith.constant 1.000000e+00 : f32
    %19 = vector.broadcast %cst_7 : f32 to vector<2x128xf32>
    %20 = arith.addf %19, %18 : vector<2x128xf32>
    %21 = arith.divf %19, %20 : vector<2x128xf32>
    %22 = vector.extract_strided_slice %9 {offsets = [0, 256], sizes = [2, 128], strides = [1, 1]} : vector<2x512xf32> to vector<2x128xf32>
    %23 = math.tanh %22 : vector<2x128xf32>
    %24 = vector.extract_strided_slice %9 {offsets = [0, 384], sizes = [2, 128], strides = [1, 1]} : vector<2x512xf32> to vector<2x128xf32>
    %25 = arith.negf %24 : vector<2x128xf32>
    %26 = math.exp %25 : vector<2x128xf32>
    %cst_8 = arith.constant 1.000000e+00 : f32
    %27 = vector.broadcast %cst_8 : f32 to vector<2x128xf32>
    %28 = arith.addf %27, %26 : vector<2x128xf32>
    %29 = arith.divf %27, %28 : vector<2x128xf32>
    %30 = arith.mulf %21, %2 : vector<2x128xf32>
    %31 = arith.mulf %15, %23 : vector<2x128xf32>
    %32 = arith.addf %30, %31 : vector<2x128xf32>
    %33 = math.tanh %32 : vector<2x128xf32>
    %34 = arith.mulf %29, %33 : vector<2x128xf32>
    %c2_i32 = arith.constant 2 : i32
    %35 = arith.muli %c0_i32, %c2_i32 : i32
    %36 = arith.index_cast %35 : i32 to index
    %c0_9 = arith.constant 0 : index
    %37 = vector.load %arg7[%36, %c0_9] : memref<16x128xf32, #tpu.memory_space<vmem>>, vector<2x128xf32>
    tpu.vector_store %arg7[%36, %c0_9], %34 {strides = array<i32>} : memref<16x128xf32, #tpu.memory_space<vmem>>, vector<2x128xf32>,
    %c1_i32 = arith.constant 1 : i32
    %38 = arith.index_cast %c1_i32 : i32 to index
    %c0_10 = arith.constant 0 : index
    %c0_11 = arith.constant 0 : index
    %39 = vector.load %arg1[%38, %c0_10, %c0_11] : memref<8x2x128xf32, #tpu.memory_space<vmem>>, vector<1x2x128xf32>
    %40 = vector.shape_cast %39 : vector<1x2x128xf32> to vector<2x128xf32>
    %41 = tpu.concatenate %40, %34 in 1 : vector<2x128xf32>, vector<2x128xf32> -> vector<2x256xf32>
    %cst_12 = arith.constant dense<0.000000e+00> : vector<2x512xf32>
    %42 = tpu.matmul %41, %0, %cst_12 {dimension_numbers = #tpu.dot_dimension_numbers<[1], [0], [0], [1], [0, 0, 1, 1], [], []>} : vector<2x256xf32>, vector<256x512xf32>, vector<2x512xf32> -> vector<2x512xf32>
    %43 = vector.broadcast %1 : vector<1x512xf32> to vector<2x512xf32>
    %44 = arith.addf %42, %43 : vector<2x512xf32>
    %45 = vector.extract_strided_slice %44 {offsets = [0, 0], sizes = [2, 128], strides = [1, 1]} : vector<2x512xf32> to vector<2x128xf32>
    %46 = arith.negf %45 : vector<2x128xf32>
    %47 = math.exp %46 : vector<2x128xf32>
    %cst_13 = arith.constant 1.000000e+00 : f32
    %48 = vector.broadcast %cst_13 : f32 to vector<2x128xf32>
    %49 = arith.addf %48, %47 : vector<2x128xf32>
    %50 = arith.divf %48, %49 : vector<2x128xf32>
    %51 = vector.extract_strided_slice %44 {offsets = [0, 128], sizes = [2, 128], strides = [1, 1]} : vector<2x512xf32> to vector<2x128xf32>
    %52 = arith.negf %51 : vector<2x128xf32>
    %53 = math.exp %52 : vector<2x128xf32>
    %cst_14 = arith.constant 1.000000e+00 : f32
    %54 = vector.broadcast %cst_14 : f32 to vector<2x128xf32>
    %55 = arith.addf %54, %53 : vector<2x128xf32>
    %56 = arith.divf %54, %55 : vector<2x128xf32>
    %57 = vector.extract_strided_slice %44 {offsets = [0, 256], sizes = [2, 128], strides = [1, 1]} : vector<2x512xf32> to vector<2x128xf32>
    %58 = math.tanh %57 : vector<2x128xf32>
    %59 = vector.extract_strided_slice %44 {offsets = [0, 384], sizes = [2, 128], strides = [1, 1]} : vector<2x512xf32> to vector<2x128xf32>
    %60 = arith.negf %59 : vector<2x128xf32>
    %61 = math.exp %60 : vector<2x128xf32>
    %cst_15 = arith.constant 1.000000e+00 : f32
    %62 = vector.broadcast %cst_15 : f32 to vector<2x128xf32>
    %63 = arith.addf %62, %61 : vector<2x128xf32>
    %64 = arith.divf %62, %63 : vector<2x128xf32>
    %65 = arith.mulf %56, %32 : vector<2x128xf32>
    %66 = arith.mulf %50, %58 : vector<2x128xf32>
    %67 = arith.addf %65, %66 : vector<2x128xf32>
    %68 = math.tanh %67 : vector<2x128xf32>
    %69 = arith.mulf %64, %68 : vector<2x128xf32>
    %c2_i32_16 = arith.constant 2 : i32
    %70 = arith.muli %c1_i32, %c2_i32_16 : i32
    %71 = arith.index_cast %70 : i32 to index
    %c0_17 = arith.constant 0 : index
    %72 = vector.load %arg7[%71, %c0_17] : memref<16x128xf32, #tpu.memory_space<vmem>>, vector<2x128xf32>
    tpu.vector_store %arg7[%71, %c0_17], %69 {strides = array<i32>} : memref<16x128xf32, #tpu.memory_space<vmem>>, vector<2x128xf32>,
    %c2_i32_18 = arith.constant 2 : i32
    %73 = arith.index_cast %c2_i32_18 : i32 to index
    %c0_19 = arith.constant 0 : index
    %c0_20 = arith.constant 0 : index
    %74 = vector.load %arg1[%73, %c0_19, %c0_20] : memref<8x2x128xf32, #tpu.memory_space<vmem>>, vector<1x2x128xf32>
    %75 = vector.shape_cast %74 : vector<1x2x128xf32> to vector<2x128xf32>
    %76 = tpu.concatenate %75, %69 in 1 : vector<2x128xf32>, vector<2x128xf32> -> vector<2x256xf32>
    %cst_21 = arith.constant dense<0.000000e+00> : vector<2x512xf32>
    %77 = tpu.matmul %76, %0, %cst_21 {dimension_numbers = #tpu.dot_dimension_numbers<[1], [0], [0], [1], [0, 0, 1, 1], [], []>} : vector<2x256xf32>, vector<256x512xf32>, vector<2x512xf32> -> vector<2x512xf32>
    %78 = vector.broadcast %1 : vector<1x512xf32> to vector<2x512xf32>
    %79 = arith.addf %77, %78 : vector<2x512xf32>
    %80 = vector.extract_strided_slice %79 {offsets = [0, 0], sizes = [2, 128], strides = [1, 1]} : vector<2x512xf32> to vector<2x128xf32>
    %81 = arith.negf %80 : vector<2x128xf32>
    %82 = math.exp %81 : vector<2x128xf32>
    %cst_22 = arith.constant 1.000000e+00 : f32
    %83 = vector.broadcast %cst_22 : f32 to vector<2x128xf32>
    %84 = arith.addf %83, %82 : vector<2x128xf32>
    %85 = arith.divf %83, %84 : vector<2x128xf32>
    %86 = vector.extract_strided_slice %79 {offsets = [0, 128], sizes = [2, 128], strides = [1, 1]} : vector<2x512xf32> to vector<2x128xf32>
    %87 = arith.negf %86 : vector<2x128xf32>
    %88 = math.exp %87 : vector<2x128xf32>
    %cst_23 = arith.constant 1.000000e+00 : f32
    %89 = vector.broadcast %cst_23 : f32 to vector<2x128xf32>
    %90 = arith.addf %89, %88 : vector<2x128xf32>
    %91 = arith.divf %89, %90 : vector<2x128xf32>
    %92 = vector.extract_strided_slice %79 {offsets = [0, 256], sizes = [2, 128], strides = [1, 1]} : vector<2x512xf32> to vector<2x128xf32>
    %93 = math.tanh %92 : vector<2x128xf32>
    %94 = vector.extract_strided_slice %79 {offsets = [0, 384], sizes = [2, 128], strides = [1, 1]} : vector<2x512xf32> to vector<2x128xf32>
    %95 = arith.negf %94 : vector<2x128xf32>
    %96 = math.exp %95 : vector<2x128xf32>
    %cst_24 = arith.constant 1.000000e+00 : f32
    %97 = vector.broadcast %cst_24 : f32 to vector<2x128xf32>
    %98 = arith.addf %97, %96 : vector<2x128xf32>
    %99 = arith.divf %97, %98 : vector<2x128xf32>
    %100 = arith.mulf %91, %67 : vector<2x128xf32>
    %101 = arith.mulf %85, %93 : vector<2x128xf32>
    %102 = arith.addf %100, %101 : vector<2x128xf32>
    %103 = math.tanh %102 : vector<2x128xf32>
    %104 = arith.mulf %99, %103 : vector<2x128xf32>
    %c2_i32_25 = arith.constant 2 : i32
    %105 = arith.muli %c2_i32_18, %c2_i32_25 : i32
    %106 = arith.index_cast %105 : i32 to index
    %c0_26 = arith.constant 0 : index
    %107 = vector.load %arg7[%106, %c0_26] : memref<16x128xf32, #tpu.memory_space<vmem>>, vector<2x128xf32>
    tpu.vector_store %arg7[%106, %c0_26], %104 {strides = array<i32>} : memref<16x128xf32, #tpu.memory_space<vmem>>, vector<2x128xf32>,
    %c3_i32 = arith.constant 3 : i32
    %108 = arith.index_cast %c3_i32 : i32 to index
    %c0_27 = arith.constant 0 : index
    %c0_28 = arith.constant 0 : index
    %109 = vector.load %arg1[%108, %c0_27, %c0_28] : memref<8x2x128xf32, #tpu.memory_space<vmem>>, vector<1x2x128xf32>
    %110 = vector.shape_cast %109 : vector<1x2x128xf32> to vector<2x128xf32>
    %111 = tpu.concatenate %110, %104 in 1 : vector<2x128xf32>, vector<2x128xf32> -> vector<2x256xf32>
    %cst_29 = arith.constant dense<0.000000e+00> : vector<2x512xf32>
    %112 = tpu.matmul %111, %0, %cst_29 {dimension_numbers = #tpu.dot_dimension_numbers<[1], [0], [0], [1], [0, 0, 1, 1], [], []>} : vector<2x256xf32>, vector<256x512xf32>, vector<2x512xf32> -> vector<2x512xf32>
    %113 = vector.broadcast %1 : vector<1x512xf32> to vector<2x512xf32>
    %114 = arith.addf %112, %113 : vector<2x512xf32>
    %115 = vector.extract_strided_slice %114 {offsets = [0, 0], sizes = [2, 128], strides = [1, 1]} : vector<2x512xf32> to vector<2x128xf32>
    %116 = arith.negf %115 : vector<2x128xf32>
    %117 = math.exp %116 : vector<2x128xf32>
    %cst_30 = arith.constant 1.000000e+00 : f32
    %118 = vector.broadcast %cst_30 : f32 to vector<2x128xf32>
    %119 = arith.addf %118, %117 : vector<2x128xf32>
    %120 = arith.divf %118, %119 : vector<2x128xf32>
    %121 = vector.extract_strided_slice %114 {offsets = [0, 128], sizes = [2, 128], strides = [1, 1]} : vector<2x512xf32> to vector<2x128xf32>
    %122 = arith.negf %121 : vector<2x128xf32>
    %123 = math.exp %122 : vector<2x128xf32>
    %cst_31 = arith.constant 1.000000e+00 : f32
    %124 = vector.broadcast %cst_31 : f32 to vector<2x128xf32>
    %125 = arith.addf %124, %123 : vector<2x128xf32>
    %126 = arith.divf %124, %125 : vector<2x128xf32>
    %127 = vector.extract_strided_slice %114 {offsets = [0, 256], sizes = [2, 128], strides = [1, 1]} : vector<2x512xf32> to vector<2x128xf32>
    %128 = math.tanh %127 : vector<2x128xf32>
    %129 = vector.extract_strided_slice %114 {offsets = [0, 384], sizes = [2, 128], strides = [1, 1]} : vector<2x512xf32> to vector<2x128xf32>
    %130 = arith.negf %129 : vector<2x128xf32>
    %131 = math.exp %130 : vector<2x128xf32>
    %cst_32 = arith.constant 1.000000e+00 : f32
    %132 = vector.broadcast %cst_32 : f32 to vector<2x128xf32>
    %133 = arith.addf %132, %131 : vector<2x128xf32>
    %134 = arith.divf %132, %133 : vector<2x128xf32>
    %135 = arith.mulf %126, %102 : vector<2x128xf32>
    %136 = arith.mulf %120, %128 : vector<2x128xf32>
    %137 = arith.addf %135, %136 : vector<2x128xf32>
    %138 = math.tanh %137 : vector<2x128xf32>
    %139 = arith.mulf %134, %138 : vector<2x128xf32>
    %c2_i32_33 = arith.constant 2 : i32
    %140 = arith.muli %c3_i32, %c2_i32_33 : i32
    %141 = arith.index_cast %140 : i32 to index
    %c0_34 = arith.constant 0 : index
    %142 = vector.load %arg7[%141, %c0_34] : memref<16x128xf32, #tpu.memory_space<vmem>>, vector<2x128xf32>
    tpu.vector_store %arg7[%141, %c0_34], %139 {strides = array<i32>} : memref<16x128xf32, #tpu.memory_space<vmem>>, vector<2x128xf32>,
    %c4_i32 = arith.constant 4 : i32
    %143 = arith.index_cast %c4_i32 : i32 to index
    %c0_35 = arith.constant 0 : index
    %c0_36 = arith.constant 0 : index
    %144 = vector.load %arg1[%143, %c0_35, %c0_36] : memref<8x2x128xf32, #tpu.memory_space<vmem>>, vector<1x2x128xf32>
    %145 = vector.shape_cast %144 : vector<1x2x128xf32> to vector<2x128xf32>
    %146 = tpu.concatenate %145, %139 in 1 : vector<2x128xf32>, vector<2x128xf32> -> vector<2x256xf32>
    %cst_37 = arith.constant dense<0.000000e+00> : vector<2x512xf32>
    %147 = tpu.matmul %146, %0, %cst_37 {dimension_numbers = #tpu.dot_dimension_numbers<[1], [0], [0], [1], [0, 0, 1, 1], [], []>} : vector<2x256xf32>, vector<256x512xf32>, vector<2x512xf32> -> vector<2x512xf32>
    %148 = vector.broadcast %1 : vector<1x512xf32> to vector<2x512xf32>
    %149 = arith.addf %147, %148 : vector<2x512xf32>
    %150 = vector.extract_strided_slice %149 {offsets = [0, 0], sizes = [2, 128], strides = [1, 1]} : vector<2x512xf32> to vector<2x128xf32>
    %151 = arith.negf %150 : vector<2x128xf32>
    %152 = math.exp %151 : vector<2x128xf32>
    %cst_38 = arith.constant 1.000000e+00 : f32
    %153 = vector.broadcast %cst_38 : f32 to vector<2x128xf32>
    %154 = arith.addf %153, %152 : vector<2x128xf32>
    %155 = arith.divf %153, %154 : vector<2x128xf32>
    %156 = vector.extract_strided_slice %149 {offsets = [0, 128], sizes = [2, 128], strides = [1, 1]} : vector<2x512xf32> to vector<2x128xf32>
    %157 = arith.negf %156 : vector<2x128xf32>
    %158 = math.exp %157 : vector<2x128xf32>
    %cst_39 = arith.constant 1.000000e+00 : f32
    %159 = vector.broadcast %cst_39 : f32 to vector<2x128xf32>
    %160 = arith.addf %159, %158 : vector<2x128xf32>
    %161 = arith.divf %159, %160 : vector<2x128xf32>
    %162 = vector.extract_strided_slice %149 {offsets = [0, 256], sizes = [2, 128], strides = [1, 1]} : vector<2x512xf32> to vector<2x128xf32>
    %163 = math.tanh %162 : vector<2x128xf32>
    %164 = vector.extract_strided_slice %149 {offsets = [0, 384], sizes = [2, 128], strides = [1, 1]} : vector<2x512xf32> to vector<2x128xf32>
    %165 = arith.negf %164 : vector<2x128xf32>
    %166 = math.exp %165 : vector<2x128xf32>
    %cst_40 = arith.constant 1.000000e+00 : f32
    %167 = vector.broadcast %cst_40 : f32 to vector<2x128xf32>
    %168 = arith.addf %167, %166 : vector<2x128xf32>
    %169 = arith.divf %167, %168 : vector<2x128xf32>
    %170 = arith.mulf %161, %137 : vector<2x128xf32>
    %171 = arith.mulf %155, %163 : vector<2x128xf32>
    %172 = arith.addf %170, %171 : vector<2x128xf32>
    %173 = math.tanh %172 : vector<2x128xf32>
    %174 = arith.mulf %169, %173 : vector<2x128xf32>
    %c2_i32_41 = arith.constant 2 : i32
    %175 = arith.muli %c4_i32, %c2_i32_41 : i32
    %176 = arith.index_cast %175 : i32 to index
    %c0_42 = arith.constant 0 : index
    %177 = vector.load %arg7[%176, %c0_42] : memref<16x128xf32, #tpu.memory_space<vmem>>, vector<2x128xf32>
    tpu.vector_store %arg7[%176, %c0_42], %174 {strides = array<i32>} : memref<16x128xf32, #tpu.memory_space<vmem>>, vector<2x128xf32>,
    %c5_i32 = arith.constant 5 : i32
    %178 = arith.index_cast %c5_i32 : i32 to index
    %c0_43 = arith.constant 0 : index
    %c0_44 = arith.constant 0 : index
    %179 = vector.load %arg1[%178, %c0_43, %c0_44] : memref<8x2x128xf32, #tpu.memory_space<vmem>>, vector<1x2x128xf32>
    %180 = vector.shape_cast %179 : vector<1x2x128xf32> to vector<2x128xf32>
    %181 = tpu.concatenate %180, %174 in 1 : vector<2x128xf32>, vector<2x128xf32> -> vector<2x256xf32>
    %cst_45 = arith.constant dense<0.000000e+00> : vector<2x512xf32>
    %182 = tpu.matmul %181, %0, %cst_45 {dimension_numbers = #tpu.dot_dimension_numbers<[1], [0], [0], [1], [0, 0, 1, 1], [], []>} : vector<2x256xf32>, vector<256x512xf32>, vector<2x512xf32> -> vector<2x512xf32>
    %183 = vector.broadcast %1 : vector<1x512xf32> to vector<2x512xf32>
    %184 = arith.addf %182, %183 : vector<2x512xf32>
    %185 = vector.extract_strided_slice %184 {offsets = [0, 0], sizes = [2, 128], strides = [1, 1]} : vector<2x512xf32> to vector<2x128xf32>
    %186 = arith.negf %185 : vector<2x128xf32>
    %187 = math.exp %186 : vector<2x128xf32>
    %cst_46 = arith.constant 1.000000e+00 : f32
    %188 = vector.broadcast %cst_46 : f32 to vector<2x128xf32>
    %189 = arith.addf %188, %187 : vector<2x128xf32>
    %190 = arith.divf %188, %189 : vector<2x128xf32>
    %191 = vector.extract_strided_slice %184 {offsets = [0, 128], sizes = [2, 128], strides = [1, 1]} : vector<2x512xf32> to vector<2x128xf32>
    %192 = arith.negf %191 : vector<2x128xf32>
    %193 = math.exp %192 : vector<2x128xf32>
    %cst_47 = arith.constant 1.000000e+00 : f32
    %194 = vector.broadcast %cst_47 : f32 to vector<2x128xf32>
    %195 = arith.addf %194, %193 : vector<2x128xf32>
    %196 = arith.divf %194, %195 : vector<2x128xf32>
    %197 = vector.extract_strided_slice %184 {offsets = [0, 256], sizes = [2, 128], strides = [1, 1]} : vector<2x512xf32> to vector<2x128xf32>
    %198 = math.tanh %197 : vector<2x128xf32>
    %199 = vector.extract_strided_slice %184 {offsets = [0, 384], sizes = [2, 128], strides = [1, 1]} : vector<2x512xf32> to vector<2x128xf32>
    %200 = arith.negf %199 : vector<2x128xf32>
    %201 = math.exp %200 : vector<2x128xf32>
    %cst_48 = arith.constant 1.000000e+00 : f32
    %202 = vector.broadcast %cst_48 : f32 to vector<2x128xf32>
    %203 = arith.addf %202, %201 : vector<2x128xf32>
    %204 = arith.divf %202, %203 : vector<2x128xf32>
    %205 = arith.mulf %196, %172 : vector<2x128xf32>
    %206 = arith.mulf %190, %198 : vector<2x128xf32>
    %207 = arith.addf %205, %206 : vector<2x128xf32>
    %208 = math.tanh %207 : vector<2x128xf32>
    %209 = arith.mulf %204, %208 : vector<2x128xf32>
    %c2_i32_49 = arith.constant 2 : i32
    %210 = arith.muli %c5_i32, %c2_i32_49 : i32
    %211 = arith.index_cast %210 : i32 to index
    %c0_50 = arith.constant 0 : index
    %212 = vector.load %arg7[%211, %c0_50] : memref<16x128xf32, #tpu.memory_space<vmem>>, vector<2x128xf32>
    tpu.vector_store %arg7[%211, %c0_50], %209 {strides = array<i32>} : memref<16x128xf32, #tpu.memory_space<vmem>>, vector<2x128xf32>,
    %c6_i32 = arith.constant 6 : i32
    %213 = arith.index_cast %c6_i32 : i32 to index
    %c0_51 = arith.constant 0 : index
    %c0_52 = arith.constant 0 : index
    %214 = vector.load %arg1[%213, %c0_51, %c0_52] : memref<8x2x128xf32, #tpu.memory_space<vmem>>, vector<1x2x128xf32>
    %215 = vector.shape_cast %214 : vector<1x2x128xf32> to vector<2x128xf32>
    %216 = tpu.concatenate %215, %209 in 1 : vector<2x128xf32>, vector<2x128xf32> -> vector<2x256xf32>
    %cst_53 = arith.constant dense<0.000000e+00> : vector<2x512xf32>
    %217 = tpu.matmul %216, %0, %cst_53 {dimension_numbers = #tpu.dot_dimension_numbers<[1], [0], [0], [1], [0, 0, 1, 1], [], []>} : vector<2x256xf32>, vector<256x512xf32>, vector<2x512xf32> -> vector<2x512xf32>
    %218 = vector.broadcast %1 : vector<1x512xf32> to vector<2x512xf32>
    %219 = arith.addf %217, %218 : vector<2x512xf32>
    %220 = vector.extract_strided_slice %219 {offsets = [0, 0], sizes = [2, 128], strides = [1, 1]} : vector<2x512xf32> to vector<2x128xf32>
    %221 = arith.negf %220 : vector<2x128xf32>
    %222 = math.exp %221 : vector<2x128xf32>
    %cst_54 = arith.constant 1.000000e+00 : f32
    %223 = vector.broadcast %cst_54 : f32 to vector<2x128xf32>
    %224 = arith.addf %223, %222 : vector<2x128xf32>
    %225 = arith.divf %223, %224 : vector<2x128xf32>
    %226 = vector.extract_strided_slice %219 {offsets = [0, 128], sizes = [2, 128], strides = [1, 1]} : vector<2x512xf32> to vector<2x128xf32>
    %227 = arith.negf %226 : vector<2x128xf32>
    %228 = math.exp %227 : vector<2x128xf32>
    %cst_55 = arith.constant 1.000000e+00 : f32
    %229 = vector.broadcast %cst_55 : f32 to vector<2x128xf32>
    %230 = arith.addf %229, %228 : vector<2x128xf32>
    %231 = arith.divf %229, %230 : vector<2x128xf32>
    %232 = vector.extract_strided_slice %219 {offsets = [0, 256], sizes = [2, 128], strides = [1, 1]} : vector<2x512xf32> to vector<2x128xf32>
    %233 = math.tanh %232 : vector<2x128xf32>
    %234 = vector.extract_strided_slice %219 {offsets = [0, 384], sizes = [2, 128], strides = [1, 1]} : vector<2x512xf32> to vector<2x128xf32>
    %235 = arith.negf %234 : vector<2x128xf32>
    %236 = math.exp %235 : vector<2x128xf32>
    %cst_56 = arith.constant 1.000000e+00 : f32
    %237 = vector.broadcast %cst_56 : f32 to vector<2x128xf32>
    %238 = arith.addf %237, %236 : vector<2x128xf32>
    %239 = arith.divf %237, %238 : vector<2x128xf32>
    %240 = arith.mulf %231, %207 : vector<2x128xf32>
    %241 = arith.mulf %225, %233 : vector<2x128xf32>
    %242 = arith.addf %240, %241 : vector<2x128xf32>
    %243 = math.tanh %242 : vector<2x128xf32>
    %244 = arith.mulf %239, %243 : vector<2x128xf32>
    %c2_i32_57 = arith.constant 2 : i32
    %245 = arith.muli %c6_i32, %c2_i32_57 : i32
    %246 = arith.index_cast %245 : i32 to index
    %c0_58 = arith.constant 0 : index
    %247 = vector.load %arg7[%246, %c0_58] : memref<16x128xf32, #tpu.memory_space<vmem>>, vector<2x128xf32>
    tpu.vector_store %arg7[%246, %c0_58], %244 {strides = array<i32>} : memref<16x128xf32, #tpu.memory_space<vmem>>, vector<2x128xf32>,
    %c7_i32 = arith.constant 7 : i32
    %248 = arith.index_cast %c7_i32 : i32 to index
    %c0_59 = arith.constant 0 : index
    %c0_60 = arith.constant 0 : index
    %249 = vector.load %arg1[%248, %c0_59, %c0_60] : memref<8x2x128xf32, #tpu.memory_space<vmem>>, vector<1x2x128xf32>
    %250 = vector.shape_cast %249 : vector<1x2x128xf32> to vector<2x128xf32>
    %251 = tpu.concatenate %250, %244 in 1 : vector<2x128xf32>, vector<2x128xf32> -> vector<2x256xf32>
    %cst_61 = arith.constant dense<0.000000e+00> : vector<2x512xf32>
    %252 = tpu.matmul %251, %0, %cst_61 {dimension_numbers = #tpu.dot_dimension_numbers<[1], [0], [0], [1], [0, 0, 1, 1], [], []>} : vector<2x256xf32>, vector<256x512xf32>, vector<2x512xf32> -> vector<2x512xf32>
    %253 = vector.broadcast %1 : vector<1x512xf32> to vector<2x512xf32>
    %254 = arith.addf %252, %253 : vector<2x512xf32>
    %255 = vector.extract_strided_slice %254 {offsets = [0, 0], sizes = [2, 128], strides = [1, 1]} : vector<2x512xf32> to vector<2x128xf32>
    %256 = arith.negf %255 : vector<2x128xf32>
    %257 = math.exp %256 : vector<2x128xf32>
    %cst_62 = arith.constant 1.000000e+00 : f32
    %258 = vector.broadcast %cst_62 : f32 to vector<2x128xf32>
    %259 = arith.addf %258, %257 : vector<2x128xf32>
    %260 = arith.divf %258, %259 : vector<2x128xf32>
    %261 = vector.extract_strided_slice %254 {offsets = [0, 128], sizes = [2, 128], strides = [1, 1]} : vector<2x512xf32> to vector<2x128xf32>
    %262 = arith.negf %261 : vector<2x128xf32>
    %263 = math.exp %262 : vector<2x128xf32>
    %cst_63 = arith.constant 1.000000e+00 : f32
    %264 = vector.broadcast %cst_63 : f32 to vector<2x128xf32>
    %265 = arith.addf %264, %263 : vector<2x128xf32>
    %266 = arith.divf %264, %265 : vector<2x128xf32>
    %267 = vector.extract_strided_slice %254 {offsets = [0, 256], sizes = [2, 128], strides = [1, 1]} : vector<2x512xf32> to vector<2x128xf32>
    %268 = math.tanh %267 : vector<2x128xf32>
    %269 = vector.extract_strided_slice %254 {offsets = [0, 384], sizes = [2, 128], strides = [1, 1]} : vector<2x512xf32> to vector<2x128xf32>
    %270 = arith.negf %269 : vector<2x128xf32>
    %271 = math.exp %270 : vector<2x128xf32>
    %cst_64 = arith.constant 1.000000e+00 : f32
    %272 = vector.broadcast %cst_64 : f32 to vector<2x128xf32>
    %273 = arith.addf %272, %271 : vector<2x128xf32>
    %274 = arith.divf %272, %273 : vector<2x128xf32>
    %275 = arith.mulf %266, %242 : vector<2x128xf32>
    %276 = arith.mulf %260, %268 : vector<2x128xf32>
    %277 = arith.addf %275, %276 : vector<2x128xf32>
    %278 = math.tanh %277 : vector<2x128xf32>
    %279 = arith.mulf %274, %278 : vector<2x128xf32>
    %c2_i32_65 = arith.constant 2 : i32
    %280 = arith.muli %c7_i32, %c2_i32_65 : i32
    %281 = arith.index_cast %280 : i32 to index
    %c0_66 = arith.constant 0 : index
    %282 = vector.load %arg7[%281, %c0_66] : memref<16x128xf32, #tpu.memory_space<vmem>>, vector<2x128xf32>
    tpu.vector_store %arg7[%281, %c0_66], %279 {strides = array<i32>} : memref<16x128xf32, #tpu.memory_space<vmem>>, vector<2x128xf32>,
    %c8_i32 = arith.constant 8 : i32
    %c0_67 = arith.constant 0 : index
    %c0_68 = arith.constant 0 : index
    %283 = vector.load %arg7[%c0_67, %c0_68] : memref<16x128xf32, #tpu.memory_space<vmem>>, vector<16x128xf32>
    %c0_69 = arith.constant 0 : index
    %c0_70 = arith.constant 0 : index
    %284 = vector.load %arg4[%c0_69, %c0_70] : memref<128x128xf32, #tpu.memory_space<vmem>>, vector<128x128xf32>
    %cst_71 = arith.constant dense<0.000000e+00> : vector<16x128xf32>
    %285 = tpu.matmul %283, %284, %cst_71 {dimension_numbers = #tpu.dot_dimension_numbers<[1], [0], [0], [1], [0, 0, 1, 1], [], []>} : vector<16x128xf32>, vector<128x128xf32>, vector<16x128xf32> -> vector<16x128xf32>
    %c0_72 = arith.constant 0 : index
    %c0_73 = arith.constant 0 : index
    %286 = vector.load %arg5[%c0_72, %c0_73] : memref<1x128xf32, #tpu.memory_space<vmem>>, vector<1x128xf32>
    %287 = vector.broadcast %286 : vector<1x128xf32> to vector<16x128xf32>
    %288 = arith.addf %285, %287 : vector<16x128xf32>
    %c0_74 = arith.constant 0 : index
    %c0_75 = arith.constant 0 : index
    %289 = vector.load %arg6[%c0_74, %c0_75] : memref<16x128xf32, #tpu.memory_space<vmem>>, vector<16x128xf32>
    tpu.vector_store %arg6[%c0_74, %c0_75], %288 {strides = array<i32>} : memref<16x128xf32, #tpu.memory_space<vmem>>, vector<16x128xf32>,
    return
  }
  func.func @transform_0(%arg0: i32) -> (i32, i32, i32) {
    %c0_i32 = arith.constant 0 : i32
    %c0_i32_0 = arith.constant 0 : i32
    %c0_i32_1 = arith.constant 0 : i32
    %c0_i32_2 = arith.constant 0 : i32
    return %c0_i32, %c0_i32_0, %c0_i32_1 : i32, i32, i32
  }
  func.func @transform_1(%arg0: i32) -> (i32, i32) {
    %c0_i32 = arith.constant 0 : i32
    %c0_i32_0 = arith.constant 0 : i32
    %c0_i32_1 = arith.constant 0 : i32
    return %c0_i32, %c0_i32_0 : i32, i32
  }
  func.func @transform_2(%arg0: i32) -> (i32, i32) {
    %c0_i32 = arith.constant 0 : i32
    %c0_i32_0 = arith.constant 0 : i32
    %c0_i32_1 = arith.constant 0 : i32
    return %c0_i32, %c0_i32_0 : i32, i32
  }
  func.func @transform_3(%arg0: i32) -> (i32, i32) {
    %c0_i32 = arith.constant 0 : i32
    %c0_i32_0 = arith.constant 0 : i32
    %c0_i32_1 = arith.constant 0 : i32
    return %c0_i32, %c0_i32_0 : i32, i32
  }
  func.func @transform_4(%arg0: i32) -> (i32, i32) {
    %c0_i32 = arith.constant 0 : i32
    %c0_i32_0 = arith.constant 0 : i32
    %c0_i32_1 = arith.constant 0 : i32
    return %c0_i32, %c0_i32_0 : i32, i32
  }
  func.func @transform_5(%arg0: i32) -> (i32, i32) {
    %c0_i32 = arith.constant 0 : i32
    %c0_i32_0 = arith.constant 0 : i32
    %c0_i32_1 = arith.constant 0 : i32
    return %c0_i32, %c0_i32_0 : i32, i32
  }
}

</mosaic_0001>

<llo_original>
// kernel: char_rnn_forward.1
$region0: #{char_rnn_forward.1}
  #allocation0 [shape = 'u32[]', space=smem, size = 0x4, offset = 0x4, fixed_abs, tag = 'smem constant byte address 0x4 - core index']
  #allocation1 [shape = 'u32[72,128]{1,0:T(1,128)}', space=vmem, size = 0x9000, scoped, tag = 'internal scratch']
  #allocation2 [shape = 'f32[16,128]{1,0:T(8,128)}', space=vmem, size = 0x2000, scoped, tag = 'scratch operand']
  %s0 = inlined_call_operand.vmem [shape: f32[8,2,128], index: 0, kind: input, shape index: {}]
  %s1 = inlined_call_operand.hbm [shape: f32[256,512], index: 1, kind: input, shape index: {}]
  %s2 = inlined_call_operand.vmem [shape: f32[1,512], index: 2, kind: input, shape index: {}]
  %s3 = inlined_call_operand.vmem [shape: f32[128,128], index: 3, kind: input, shape index: {}]
  %s4 = inlined_call_operand.vmem [shape: f32[1,128], index: 4, kind: input, shape index: {}]
  %s5 = inlined_call_operand.vmem [shape: f32[16,128], index: 5, kind: output, shape index: {}]
  %s6 = sld [smem:[#allocation0]]
  $region34: #{char_rnn_forward.1} parent=0
    _
  %s8 = ssub.s32 1, %s6
  %s9 = scalar_select 0, %s8, %s6
  $region1: #{char_rnn_forward.1} parent=0
    #allocation3 [shape = 'u8[524288]{0}', space=vmem, size = 0x80000, scoped, tag = 'input window, operand 1, single buffered']
    #allocation4 [shape = 's32[1]{0}', space=sflag, size = 0x4, scoped, tag = 'scoped memory for char_rnn_forward.1']
    %10 = vsyncpa [#allocation4], 0
    // Predicated region
    $region2: #{char_rnn_forward.1} parent=1 // pred_check
      _
    $region3: #{char_rnn_forward.1} parent=1 // pred_check_branch
      %12 = sbr.rel (0) target = $region5
    $region4: #{char_rnn_forward.1} parent=1 // pred_region
      _
    $region5: #{char_rnn_forward.1} parent=1 // pred_fallthru
      _
    // Predicated region
    $region6: #{char_rnn_forward.1} parent=1 // pred_check
      _
    $region7: #{char_rnn_forward.1} parent=1 // pred_check_branch
      %14 = sbr.rel (0) target = $region9
    $region8: #{char_rnn_forward.1} parent=1 // pred_region
      %16 = vsyncadd [#allocation4], 0
      %s17 = sshll.u32 %s1, 4
      %s18 = int_to_ptr.hbm [resolvable:$true] %s17
      %s19 = sshll.u32 [#allocation3], 4
      %s20 = int_to_ptr.vmem [resolvable:$true] %s19
      %25 = dma.hbm_to_vmem [thread:$0]  %s18, 16384, %s20, [#allocation4], 512, 512, 32
    $region9: #{char_rnn_forward.1} parent=1 // pred_fallthru
      _
    // Predicated region
    $region10: #{char_rnn_forward.1} parent=1 // pred_check
      _
    $region11: #{char_rnn_forward.1} parent=1 // pred_check_branch
      %27 = sbr.rel (0) target = $region13
    $region12: #{char_rnn_forward.1} parent=1 // pred_region
      _
    $region13: #{char_rnn_forward.1} parent=1 // pred_fallthru
      _
    // Predicated region
    $region14: #{char_rnn_forward.1} parent=1 // pred_check
      _
    $region15: #{char_rnn_forward.1} parent=1 // pred_check_branch
      %29 = sbr.rel (0) target = $region17
    $region16: #{char_rnn_forward.1} parent=1 // pred_region
      _
    $region17: #{char_rnn_forward.1} parent=1 // pred_fallthru
      _
    // Predicated region
    $region18: #{char_rnn_forward.1} parent=1 // pred_check
      _
    $region19: #{char_rnn_forward.1} parent=1 // pred_check_branch
      %31 = sbr.rel (0) target = $region21
    $region20: #{char_rnn_forward.1} parent=1 // pred_region
      _
    $region21: #{char_rnn_forward.1} parent=1 // pred_fallthru
      _
    // Predicated region
    $region22: #{char_rnn_forward.1} parent=1 // pred_check
      _
    $region23: #{char_rnn_forward.1} parent=1 // pred_check_branch
      %33 = sbr.rel (0) target = $region25
    $region24: #{char_rnn_forward.1} parent=1 // pred_region
      %35 = dma.done [#allocation4], 16384
    $region25: #{char_rnn_forward.1} parent=1 // pred_fallthru
      _
    %v36 = vld [vmem:[#allocation3] sm:$0xff]
    %v37 = vld [vmem:[#allocation3 + $0x8] sm:$0xff]
    %v38 = vld [vmem:[#allocation3 + $0x10] sm:$0xff]
    %v39 = vld [vmem:[#allocation3 + $0x18] sm:$0xff]
    %v40 = vld [vmem:[#allocation3 + $0x20] sm:$0xff]
    %v41 = vld [vmem:[#allocation3 + $0x28] sm:$0xff]
    %v42 = vld [vmem:[#allocation3 + $0x30] sm:$0xff]
    %v43 = vld [vmem:[#allocation3 + $0x38] sm:$0xff]
    %v44 = vld [vmem:[#allocation3 + $0x40] sm:$0xff]
    %v45 = vld [vmem:[#allocation3 + $0x48] sm:$0xff]
    %v46 = vld [vmem:[#allocation3 + $0x50] sm:$0xff]
    %v47 = vld [vmem:[#allocation3 + $0x58] sm:$0xff]
    %v48 = vld [vmem:[#allocation3 + $0x60] sm:$0xff]
    %v49 = vld [vmem:[#allocation3 + $0x68] sm:$0xff]
    %v50 = vld [vmem:[#allocation3 + $0x70] sm:$0xff]
    %v51 = vld [vmem:[#allocation3 + $0x78] sm:$0xff]
    %v52 = vld [vmem:[#allocation3 + $0x80] sm:$0xff]
    %v53 = vld [vmem:[#allocation3 + $0x88] sm:$0xff]
    %v54 = vld [vmem:[#allocation3 + $0x90] sm:$0xff]
    %v55 = vld [vmem:[#allocation3 + $0x98] sm:$0xff]
    %v56 = vld [vmem:[#allocation3 + $0xa0] sm:$0xff]
    %v57 = vld [vmem:[#allocation3 + $0xa8] sm:$0xff]
    %v58 = vld [vmem:[#allocation3 + $0xb0] sm:$0xff]
    %v59 = vld [vmem:[#allocation3 + $0xb8] sm:$0xff]
    %v60 = vld [vmem:[#allocation3 + $0xc0] sm:$0xff]
    %v61 = vld [vmem:[#allocation3 + $0xc8] sm:$0xff]
    %v62 = vld [vmem:[#allocation3 + $0xd0] sm:$0xff]
    %v63 = vld [vmem:[#allocation3 + $0xd8] sm:$0xff]
    %v64 = vld [vmem:[#allocation3 + $0xe0] sm:$0xff]
    %v65 = vld [vmem:[#allocation3 + $0xe8] sm:$0xff]
    %v66 = vld [vmem:[#allocation3 + $0xf0] sm:$0xff]
    %v67 = vld [vmem:[#allocation3 + $0xf8] sm:$0xff]
    %v68 = vld [vmem:[#allocation3 + $0x100] sm:$0xff]
    %v69 = vld [vmem:[#allocation3 + $0x108] sm:$0xff]
    %v70 = vld [vmem:[#allocation3 + $0x110] sm:$0xff]
    %v71 = vld [vmem:[#allocation3 + $0x118] sm:$0xff]
    %v72 = vld [vmem:[#allocation3 + $0x120] sm:$0xff]
    %v73 = vld [vmem:[#allocation3 + $0x128] sm:$0xff]
    %v74 = vld [vmem:[#allocation3 + $0x130] sm:$0xff]
    %v75 = vld [vmem:[#allocation3 + $0x138] sm:$0xff]
    %v76 = vld [vmem:[#allocation3 + $0x140] sm:$0xff]
    %v77 = vld [vmem:[#allocation3 + $0x148] sm:$0xff]
    %v78 = vld [vmem:[#allocation3 + $0x150] sm:$0xff]
    %v79 = vld [vmem:[#allocation3 + $0x158] sm:$0xff]
    %v80 = vld [vmem:[#allocation3 + $0x160] sm:$0xff]
    %v81 = vld [vmem:[#allocation3 + $0x168] sm:$0xff]
    %v82 = vld [vmem:[#allocation3 + $0x170] sm:$0xff]
    %v83 = vld [vmem:[#allocation3 + $0x178] sm:$0xff]
    %v84 = vld [vmem:[#allocation3 + $0x180] sm:$0xff]
    %v85 = vld [vmem:[#allocation3 + $0x188] sm:$0xff]
    %v86 = vld [vmem:[#allocation3 + $0x190] sm:$0xff]
    %v87 = vld [vmem:[#allocation3 + $0x198] sm:$0xff]
    %v88 = vld [vmem:[#allocation3 + $0x1a0] sm:$0xff]
    %v89 = vld [vmem:[#allocation3 + $0x1a8] sm:$0xff]
    %v90 = vld [vmem:[#allocation3 + $0x1b0] sm:$0xff]
    %v91 = vld [vmem:[#allocation3 + $0x1b8] sm:$0xff]
    %v92 = vld [vmem:[#allocation3 + $0x1c0] sm:$0xff]
    %v93 = vld [vmem:[#allocation3 + $0x1c8] sm:$0xff]
    %v94 = vld [vmem:[#allocation3 + $0x1d0] sm:$0xff]
    %v95 = vld [vmem:[#allocation3 + $0x1d8] sm:$0xff]
    %v96 = vld [vmem:[#allocation3 + $0x1e0] sm:$0xff]
    %v97 = vld [vmem:[#allocation3 + $0x1e8] sm:$0xff]
    %v98 = vld [vmem:[#allocation3 + $0x1f0] sm:$0xff]
    %v99 = vld [vmem:[#allocation3 + $0x1f8] sm:$0xff]
    %v100 = vld [vmem:[#allocation3 + $0x200] sm:$0xff]
    %v101 = vld [vmem:[#allocation3 + $0x208] sm:$0xff]
    %v102 = vld [vmem:[#allocation3 + $0x210] sm:$0xff]
    %v103 = vld [vmem:[#allocation3 + $0x218] sm:$0xff]
    %v104 = vld [vmem:[#allocation3 + $0x220] sm:$0xff]
    %v105 = vld [vmem:[#allocation3 + $0x228] sm:$0xff]
    %v106 = vld [vmem:[#allocation3 + $0x230] sm:$0xff]
    %v107 = vld [vmem:[#allocation3 + $0x238] sm:$0xff]
    %v108 = vld [vmem:[#allocation3 + $0x240] sm:$0xff]
    %v109 = vld [vmem:[#allocation3 + $0x248] sm:$0xff]
    %v110 = vld [vmem:[#allocation3 + $0x250] sm:$0xff]
    %v111 = vld [vmem:[#allocation3 + $0x258] sm:$0xff]
    %v112 = vld [vmem:[#allocation3 + $0x260] sm:$0xff]
    %v113 = vld [vmem:[#allocation3 + $0x268] sm:$0xff]
    %v114 = vld [vmem:[#allocation3 + $0x270] sm:$0xff]
    %v115 = vld [vmem:[#allocation3 + $0x278] sm:$0xff]
    %v116 = vld [vmem:[#allocation3 + $0x280] sm:$0xff]
    %v117 = vld [vmem:[#allocation3 + $0x288] sm:$0xff]
    %v118 = vld [vmem:[#allocation3 + $0x290] sm:$0xff]
    %v119 = vld [vmem:[#allocation3 + $0x298] sm:$0xff]
    %v120 = vld [vmem:[#allocation3 + $0x2a0] sm:$0xff]
    %v121 = vld [vmem:[#allocation3 + $0x2a8] sm:$0xff]
    %v122 = vld [vmem:[#allocation3 + $0x2b0] sm:$0xff]
    %v123 = vld [vmem:[#allocation3 + $0x2b8] sm:$0xff]
    %v124 = vld [vmem:[#allocation3 + $0x2c0] sm:$0xff]
    %v125 = vld [vmem:[#allocation3 + $0x2c8] sm:$0xff]
    %v126 = vld [vmem:[#allocation3 + $0x2d0] sm:$0xff]
    %v127 = vld [vmem:[#allocation3 + $0x2d8] sm:$0xff]
    %v128 = vld [vmem:[#allocation3 + $0x2e0] sm:$0xff]
    %v129 = vld [vmem:[#allocation3 + $0x2e8] sm:$0xff]
    %v130 = vld [vmem:[#allocation3 + $0x2f0] sm:$0xff]
    %v131 = vld [vmem:[#allocation3 + $0x2f8] sm:$0xff]
    %v132 = vld [vmem:[#allocation3 + $0x300] sm:$0xff]
    %v133 = vld [vmem:[#allocation3 + $0x308] sm:$0xff]
    %v134 = vld [vmem:[#allocation3 + $0x310] sm:$0xff]
    %v135 = vld [vmem:[#allocation3 + $0x318] sm:$0xff]
    %v136 = vld [vmem:[#allocation3 + $0x320] sm:$0xff]
    %v137 = vld [vmem:[#allocation3 + $0x328] sm:$0xff]
    %v138 = vld [vmem:[#allocation3 + $0x330] sm:$0xff]
    %v139 = vld [vmem:[#allocation3 + $0x338] sm:$0xff]
    %v140 = vld [vmem:[#allocation3 + $0x340] sm:$0xff]
    %v141 = vld [vmem:[#allocation3 + $0x348] sm:$0xff]
    %v142 = vld [vmem:[#allocation3 + $0x350] sm:$0xff]
    %v143 = vld [vmem:[#allocation3 + $0x358] sm:$0xff]
    %v144 = vld [vmem:[#allocation3 + $0x360] sm:$0xff]
    %v145 = vld [vmem:[#allocation3 + $0x368] sm:$0xff]
    %v146 = vld [vmem:[#allocation3 + $0x370] sm:$0xff]
    %v147 = vld [vmem:[#allocation3 + $0x378] sm:$0xff]
    %v148 = vld [vmem:[#allocation3 + $0x380] sm:$0xff]
    %v149 = vld [vmem:[#allocation3 + $0x388] sm:$0xff]
    %v150 = vld [vmem:[#allocation3 + $0x390] sm:$0xff]
    %v151 = vld [vmem:[#allocation3 + $0x398] sm:$0xff]
    %v152 = vld [vmem:[#allocation3 + $0x3a0] sm:$0xff]
    %v153 = vld [vmem:[#allocation3 + $0x3a8] sm:$0xff]
    %v154 = vld [vmem:[#allocation3 + $0x3b0] sm:$0xff]
    %v155 = vld [vmem:[#allocation3 + $0x3b8] sm:$0xff]
    %v156 = vld [vmem:[#allocation3 + $0x3c0] sm:$0xff]
    %v157 = vld [vmem:[#allocation3 + $0x3c8] sm:$0xff]
    %v158 = vld [vmem:[#allocation3 + $0x3d0] sm:$0xff]
    %v159 = vld [vmem:[#allocation3 + $0x3d8] sm:$0xff]
    %v160 = vld [vmem:[#allocation3 + $0x3e0] sm:$0xff]
    %v161 = vld [vmem:[#allocation3 + $0x3e8] sm:$0xff]
    %v162 = vld [vmem:[#allocation3 + $0x3f0] sm:$0xff]
    %v163 = vld [vmem:[#allocation3 + $0x3f8] sm:$0xff]
    %v164 = vld [vmem:[%s2] sm:$0xf]
    %v165 = vld [vmem:[%s0] sm:$0x3]
    %v167 = vperm.slane %v164, 0
    %v168 = vperm.slane %v164, 1
    %v169 = vperm.slane %v164, 2
    %v170 = vperm.slane %v164, 3
    %175 = vmatpush.msra.mxu0 %v96
    %176 = vmatpush.msra.mxu0 %v92
    %177 = vmatpush.msra.mxu0 %v88
    %178 = vmatpush.msra.mxu0 %v84
    %179 = vmatpush.msra.mxu0 %v80
    %180 = vmatpush.msra.mxu0 %v76
    %181 = vmatpush.msra.mxu0 %v72
    %182 = vmatpush.msra.mxu0 %v68
    %183 = vmatpush.msra.mxu0 %v64
    %184 = vmatpush.msra.mxu0 %v60
    %185 = vmatpush.msra.mxu0 %v56
    %186 = vmatpush.msra.mxu0 %v52
    %187 = vmatpush.msra.mxu0 %v48
    %188 = vmatpush.msra.mxu0 %v44
    %189 = vmatpush.msra.mxu0 %v40
    %190 = vmatpush.msra.mxu0 %v36
    %191 = vmatmul.f32.gmra.mxu0 %v165
    %v192 = vpop.f32.mrf.mxu0
    %v193 = vadd.f32 %v167, %v192
    %194 = vdwg.mxu0
    %195 = vmatpush.msra.mxu0 %v160
    %196 = vmatpush.msra.mxu0 %v156
    %197 = vmatpush.msra.mxu0 %v152
    %198 = vmatpush.msra.mxu0 %v148
    %199 = vmatpush.msra.mxu0 %v144
    %200 = vmatpush.msra.mxu0 %v140
    %201 = vmatpush.msra.mxu0 %v136
    %202 = vmatpush.msra.mxu0 %v132
    %203 = vmatpush.msra.mxu0 %v128
    %204 = vmatpush.msra.mxu0 %v124
    %205 = vmatpush.msra.mxu0 %v120
    %206 = vmatpush.msra.mxu0 %v116
    %207 = vmatpush.msra.mxu0 %v112
    %208 = vmatpush.msra.mxu0 %v108
    %209 = vmatpush.msra.mxu0 %v104
    %210 = vmatpush.msra.mxu0 %v100
    %211 = vmatmul.f32.gmra.mxu0 0.0
    %v212 = vpop.f32.mrf.mxu0
    %v213 = vadd.f32 %v193, %v212
    %214 = vdwg.mxu0
    %215 = vmatpush.msra.mxu0 %v97
    %216 = vmatpush.msra.mxu0 %v93
    %217 = vmatpush.msra.mxu0 %v89
    %218 = vmatpush.msra.mxu0 %v85
    %219 = vmatpush.msra.mxu0 %v81
    %220 = vmatpush.msra.mxu0 %v77
    %221 = vmatpush.msra.mxu0 %v73
    %222 = vmatpush.msra.mxu0 %v69
    %223 = vmatpush.msra.mxu0 %v65
    %224 = vmatpush.msra.mxu0 %v61
    %225 = vmatpush.msra.mxu0 %v57
    %226 = vmatpush.msra.mxu0 %v53
    %227 = vmatpush.msra.mxu0 %v49
    %228 = vmatpush.msra.mxu0 %v45
    %229 = vmatpush.msra.mxu0 %v41
    %230 = vmatpush.msra.mxu0 %v37
    %231 = vmatmul.f32.gmra.mxu0 %v165
    %v232 = vpop.f32.mrf.mxu0
    %v233 = vadd.f32 %v168, %v232
    %234 = vdwg.mxu0
    %235 = vmatpush.msra.mxu0 %v161
    %236 = vmatpush.msra.mxu0 %v157
    %237 = vmatpush.msra.mxu0 %v153
    %238 = vmatpush.msra.mxu0 %v149
    %239 = vmatpush.msra.mxu0 %v145
    %240 = vmatpush.msra.mxu0 %v141
    %241 = vmatpush.msra.mxu0 %v137
    %242 = vmatpush.msra.mxu0 %v133
    %243 = vmatpush.msra.mxu0 %v129
    %244 = vmatpush.msra.mxu0 %v125
    %245 = vmatpush.msra.mxu0 %v121
    %246 = vmatpush.msra.mxu0 %v117
    %247 = vmatpush.msra.mxu0 %v113
    %248 = vmatpush.msra.mxu0 %v109
    %249 = vmatpush.msra.mxu0 %v105
    %250 = vmatpush.msra.mxu0 %v101
    %251 = vmatmul.f32.gmra.mxu0 0.0
    %v252 = vpop.f32.mrf.mxu0
    %v253 = vadd.f32 %v233, %v252
    %254 = vdwg.mxu0
    %255 = vmatpush.msra.mxu0 %v98
    %256 = vmatpush.msra.mxu0 %v94
    %257 = vmatpush.msra.mxu0 %v90
    %258 = vmatpush.msra.mxu0 %v86
    %259 = vmatpush.msra.mxu0 %v82
    %260 = vmatpush.msra.mxu0 %v78
    %261 = vmatpush.msra.mxu0 %v74
    %262 = vmatpush.msra.mxu0 %v70
    %263 = vmatpush.msra.mxu0 %v66
    %264 = vmatpush.msra.mxu0 %v62
    %265 = vmatpush.msra.mxu0 %v58
    %266 = vmatpush.msra.mxu0 %v54
    %267 = vmatpush.msra.mxu0 %v50
    %268 = vmatpush.msra.mxu0 %v46
    %269 = vmatpush.msra.mxu0 %v42
    %270 = vmatpush.msra.mxu0 %v38
    %271 = vmatmul.f32.gmra.mxu0 %v165
    %v272 = vpop.f32.mrf.mxu0
    %v273 = vadd.f32 %v169, %v272
    %274 = vdwg.mxu0
    %275 = vmatpush.msra.mxu0 %v162
    %276 = vmatpush.msra.mxu0 %v158
    %277 = vmatpush.msra.mxu0 %v154
    %278 = vmatpush.msra.mxu0 %v150
    %279 = vmatpush.msra.mxu0 %v146
    %280 = vmatpush.msra.mxu0 %v142
    %281 = vmatpush.msra.mxu0 %v138
    %282 = vmatpush.msra.mxu0 %v134
    %283 = vmatpush.msra.mxu0 %v130
    %284 = vmatpush.msra.mxu0 %v126
    %285 = vmatpush.msra.mxu0 %v122
    %286 = vmatpush.msra.mxu0 %v118
    %287 = vmatpush.msra.mxu0 %v114
    %288 = vmatpush.msra.mxu0 %v110
    %289 = vmatpush.msra.mxu0 %v106
    %290 = vmatpush.msra.mxu0 %v102
    %291 = vmatmul.f32.gmra.mxu0 0.0
    %v292 = vpop.f32.mrf.mxu0
    %v293 = vadd.f32 %v273, %v292
    %294 = vdwg.mxu0
    %295 = vmatpush.msra.mxu0 %v99
    %296 = vmatpush.msra.mxu0 %v95
    %297 = vmatpush.msra.mxu0 %v91
    %298 = vmatpush.msra.mxu0 %v87
    %299 = vmatpush.msra.mxu0 %v83
    %300 = vmatpush.msra.mxu0 %v79
    %301 = vmatpush.msra.mxu0 %v75
    %302 = vmatpush.msra.mxu0 %v71
    %303 = vmatpush.msra.mxu0 %v67
    %304 = vmatpush.msra.mxu0 %v63
    %305 = vmatpush.msra.mxu0 %v59
    %306 = vmatpush.msra.mxu0 %v55
    %307 = vmatpush.msra.mxu0 %v51
    %308 = vmatpush.msra.mxu0 %v47
    %309 = vmatpush.msra.mxu0 %v43
    %310 = vmatpush.msra.mxu0 %v39
    %311 = vmatmul.f32.gmra.mxu0 %v165
    %v312 = vpop.f32.mrf.mxu0
    %v313 = vadd.f32 %v170, %v312
    %314 = vdwg.mxu0
    %315 = vmatpush.msra.mxu0 %v163
    %316 = vmatpush.msra.mxu0 %v159
    %317 = vmatpush.msra.mxu0 %v155
    %318 = vmatpush.msra.mxu0 %v151
    %319 = vmatpush.msra.mxu0 %v147
    %320 = vmatpush.msra.mxu0 %v143
    %321 = vmatpush.msra.mxu0 %v139
    %322 = vmatpush.msra.mxu0 %v135
    %323 = vmatpush.msra.mxu0 %v131
    %324 = vmatpush.msra.mxu0 %v127
    %325 = vmatpush.msra.mxu0 %v123
    %326 = vmatpush.msra.mxu0 %v119
    %327 = vmatpush.msra.mxu0 %v115
    %328 = vmatpush.msra.mxu0 %v111
    %329 = vmatpush.msra.mxu0 %v107
    %330 = vmatpush.msra.mxu0 %v103
    %331 = vmatmul.f32.gmra.mxu0 0.0
    %v332 = vpop.f32.mrf.mxu0
    %v333 = vadd.f32 %v313, %v332
    %334 = vdwg.mxu0
    %v335 = vxor.u32 %v213, 2147483648
    %v336 = vmul.f32 %v335, 1.442695
    %v337 = vpow.pop %v336
    %v338 = vadd.f32 %v337, 1.0
    %v339 = vrcp.pop %v338
    %v340 = vmul.f32 %v338, %v339
    %v341 = vsub.f32 1.0, %v340
    %v342 = vmul.f32 %v339, %v341
    %v343 = vadd.f32 %v339, %v342
    %vm344 = vweird.f32 %v338
    %vm345 = vweird.f32 %v339
    %vm346 = vmor %vm344, %vm345
    %v347 = vsel %vm346, %v339, %v343
    %v348 = vand.u32 2147483647, %v338
    %vm349 = vcmp.eq.f32.partialorder %v348, 8.507059e+37
    %v350 = vand.u32 %v338, 2147483648
    %v351 = vor.u32 1.1754944e-38, %v350
    %v352 = vsel %vm349, %v351, %v347
    %v353 = vmul.f32 1.0, %v352
    %v354 = vxor.u32 %v253, 2147483648
    %v355 = vmul.f32 %v354, 1.442695
    %v356 = vpow.pop %v355
    %v357 = vadd.f32 %v356, 1.0
    %v358 = vrcp.pop %v357
    %v359 = vmul.f32 %v357, %v358
    %v360 = vsub.f32 1.0, %v359
    %v361 = vmul.f32 %v358, %v360
    %v362 = vadd.f32 %v358, %v361
    %vm363 = vweird.f32 %v357
    %vm364 = vweird.f32 %v358
    %vm365 = vmor %vm363, %vm364
    %v366 = vsel %vm365, %v358, %v362
    %v367 = vand.u32 2147483647, %v357
    %vm368 = vcmp.eq.f32.partialorder %v367, 8.507059e+37
    %v369 = vand.u32 %v357, 2147483648
    %v370 = vor.u32 1.1754944e-38, %v369
    %v371 = vsel %vm368, %v370, %v366
    %v372 = vmul.f32 1.0, %v371
    %v373 = vtanh.pop %v293
    %v374 = vxor.u32 %v333, 2147483648
    %v375 = vmul.f32 %v374, 1.442695
    %v376 = vpow.pop %v375
    %v377 = vadd.f32 %v376, 1.0
    %v378 = vrcp.pop %v377
    %v379 = vmul.f32 %v377, %v378
    %v380 = vsub.f32 1.0, %v379
    %v381 = vmul.f32 %v378, %v380
    %v382 = vadd.f32 %v378, %v381
    %vm383 = vweird.f32 %v377
    %vm384 = vweird.f32 %v378
    %vm385 = vmor %vm383, %vm384
    %v386 = vsel %vm385, %v378, %v382
    %v387 = vand.u32 2147483647, %v377
    %vm388 = vcmp.eq.f32.partialorder %v387, 8.507059e+37
    %v389 = vand.u32 %v377, 2147483648
    %v390 = vor.u32 1.1754944e-38, %v389
    %v391 = vsel %vm388, %v390, %v386
    %v392 = vmul.f32 1.0, %v391
    %v393 = vmul.f32 %v372, 0.0
    %v394 = vmul.f32 %v353, %v373
    %v395 = vadd.f32 %v393, %v394
    %v396 = vtanh.pop %v395
    %v397 = vmul.f32 %v392, %v396
    %398 = vst [vmem:[#allocation2] sm:$0x3] %v397
    %s399 = scalar_lea.vmem %s0, 2
    %v400 = vld [vmem:[%s399] sm:$0x3]
    %401 = vmatpush.msra.mxu0 %v96
    %402 = vmatpush.msra.mxu0 %v92
    %403 = vmatpush.msra.mxu0 %v88
    %404 = vmatpush.msra.mxu0 %v84
    %405 = vmatpush.msra.mxu0 %v80
    %406 = vmatpush.msra.mxu0 %v76
    %407 = vmatpush.msra.mxu0 %v72
    %408 = vmatpush.msra.mxu0 %v68
    %409 = vmatpush.msra.mxu0 %v64
    %410 = vmatpush.msra.mxu0 %v60
    %411 = vmatpush.msra.mxu0 %v56
    %412 = vmatpush.msra.mxu0 %v52
    %413 = vmatpush.msra.mxu0 %v48
    %414 = vmatpush.msra.mxu0 %v44
    %415 = vmatpush.msra.mxu0 %v40
    %416 = vmatpush.msra.mxu0 %v36
    %417 = vmatmul.f32.gmra.mxu0 %v400
    %v418 = vpop.f32.mrf.mxu0
    %v419 = vadd.f32 %v167, %v418
    %420 = vdwg.mxu0
    %421 = vmatpush.msra.mxu0 %v160
    %422 = vmatpush.msra.mxu0 %v156
    %423 = vmatpush.msra.mxu0 %v152
    %424 = vmatpush.msra.mxu0 %v148
    %425 = vmatpush.msra.mxu0 %v144
    %426 = vmatpush.msra.mxu0 %v140
    %427 = vmatpush.msra.mxu0 %v136
    %428 = vmatpush.msra.mxu0 %v132
    %429 = vmatpush.msra.mxu0 %v128
    %430 = vmatpush.msra.mxu0 %v124
    %431 = vmatpush.msra.mxu0 %v120
    %432 = vmatpush.msra.mxu0 %v116
    %433 = vmatpush.msra.mxu0 %v112
    %434 = vmatpush.msra.mxu0 %v108
    %435 = vmatpush.msra.mxu0 %v104
    %436 = vmatpush.msra.mxu0 %v100
    %437 = vmatmul.f32.gmra.mxu0 %v397
    %v438 = vpop.f32.mrf.mxu0
    %v439 = vadd.f32 %v419, %v438
    %440 = vdwg.mxu0
    %441 = vmatpush.msra.mxu0 %v97
    %442 = vmatpush.msra.mxu0 %v93
    %443 = vmatpush.msra.mxu0 %v89
    %444 = vmatpush.msra.mxu0 %v85
    %445 = vmatpush.msra.mxu0 %v81
    %446 = vmatpush.msra.mxu0 %v77
    %447 = vmatpush.msra.mxu0 %v73
    %448 = vmatpush.msra.mxu0 %v69
    %449 = vmatpush.msra.mxu0 %v65
    %450 = vmatpush.msra.mxu0 %v61
    %451 = vmatpush.msra.mxu0 %v57
    %452 = vmatpush.msra.mxu0 %v53
    %453 = vmatpush.msra.mxu0 %v49
    %454 = vmatpush.msra.mxu0 %v45
    %455 = vmatpush.msra.mxu0 %v41
    %456 = vmatpush.msra.mxu0 %v37
    %457 = vmatmul.f32.gmra.mxu0 %v400
    %v458 = vpop.f32.mrf.mxu0
    %v459 = vadd.f32 %v168, %v458
    %460 = vdwg.mxu0
    %461 = vmatpush.msra.mxu0 %v161
    %462 = vmatpush.msra.mxu0 %v157
    %463 = vmatpush.msra.mxu0 %v153
    %464 = vmatpush.msra.mxu0 %v149
    %465 = vmatpush.msra.mxu0 %v145
    %466 = vmatpush.msra.mxu0 %v141
    %467 = vmatpush.msra.mxu0 %v137
    %468 = vmatpush.msra.mxu0 %v133
    %469 = vmatpush.msra.mxu0 %v129
    %470 = vmatpush.msra.mxu0 %v125
    %471 = vmatpush.msra.mxu0 %v121
    %472 = vmatpush.msra.mxu0 %v117
    %473 = vmatpush.msra.mxu0 %v113
    %474 = vmatpush.msra.mxu0 %v109
    %475 = vmatpush.msra.mxu0 %v105
    %476 = vmatpush.msra.mxu0 %v101
    %477 = vmatmul.f32.gmra.mxu0 %v397
    %v478 = vpop.f32.mrf.mxu0
    %v479 = vadd.f32 %v459, %v478
    %480 = vdwg.mxu0
    %481 = vmatpush.msra.mxu0 %v98
    %482 = vmatpush.msra.mxu0 %v94
    %483 = vmatpush.msra.mxu0 %v90
    %484 = vmatpush.msra.mxu0 %v86
    %485 = vmatpush.msra.mxu0 %v82
    %486 = vmatpush.msra.mxu0 %v78
    %487 = vmatpush.msra.mxu0 %v74
    %488 = vmatpush.msra.mxu0 %v70
    %489 = vmatpush.msra.mxu0 %v66
    %490 = vmatpush.msra.mxu0 %v62
    %491 = vmatpush.msra.mxu0 %v58
    %492 = vmatpush.msra.mxu0 %v54
    %493 = vmatpush.msra.mxu0 %v50
    %494 = vmatpush.msra.mxu0 %v46
    %495 = vmatpush.msra.mxu0 %v42
    %496 = vmatpush.msra.mxu0 %v38
    %497 = vmatmul.f32.gmra.mxu0 %v400
    %v498 = vpop.f32.mrf.mxu0
    %v499 = vadd.f32 %v169, %v498
    %500 = vdwg.mxu0
    %501 = vmatpush.msra.mxu0 %v162
    %502 = vmatpush.msra.mxu0 %v158
    %503 = vmatpush.msra.mxu0 %v154
    %504 = vmatpush.msra.mxu0 %v150
    %505 = vmatpush.msra.mxu0 %v146
    %506 = vmatpush.msra.mxu0 %v142
    %507 = vmatpush.msra.mxu0 %v138
    %508 = vmatpush.msra.mxu0 %v134
    %509 = vmatpush.msra.mxu0 %v130
    %510 = vmatpush.msra.mxu0 %v126
    %511 = vmatpush.msra.mxu0 %v122
    %512 = vmatpush.msra.mxu0 %v118
    %513 = vmatpush.msra.mxu0 %v114
    %514 = vmatpush.msra.mxu0 %v110
    %515 = vmatpush.msra.mxu0 %v106
    %516 = vmatpush.msra.mxu0 %v102
    %517 = vmatmul.f32.gmra.mxu0 %v397
    %v518 = vpop.f32.mrf.mxu0
    %v519 = vadd.f32 %v499, %v518
    %520 = vdwg.mxu0
    %521 = vmatpush.msra.mxu0 %v99
    %522 = vmatpush.msra.mxu0 %v95
    %523 = vmatpush.msra.mxu0 %v91
    %524 = vmatpush.msra.mxu0 %v87
    %525 = vmatpush.msra.mxu0 %v83
    %526 = vmatpush.msra.mxu0 %v79
    %527 = vmatpush.msra.mxu0 %v75
    %528 = vmatpush.msra.mxu0 %v71
    %529 = vmatpush.msra.mxu0 %v67
    %530 = vmatpush.msra.mxu0 %v63
    %531 = vmatpush.msra.mxu0 %v59
    %532 = vmatpush.msra.mxu0 %v55
    %533 = vmatpush.msra.mxu0 %v51
    %534 = vmatpush.msra.mxu0 %v47
    %535 = vmatpush.msra.mxu0 %v43
    %536 = vmatpush.msra.mxu0 %v39
    %537 = vmatmul.f32.gmra.mxu0 %v400
    %v538 = vpop.f32.mrf.mxu0
    %v539 = vadd.f32 %v170, %v538
    %540 = vdwg.mxu0
    %541 = vmatpush.msra.mxu0 %v163
    %542 = vmatpush.msra.mxu0 %v159
    %543 = vmatpush.msra.mxu0 %v155
    %544 = vmatpush.msra.mxu0 %v151
    %545 = vmatpush.msra.mxu0 %v147
    %546 = vmatpush.msra.mxu0 %v143
    %547 = vmatpush.msra.mxu0 %v139
    %548 = vmatpush.msra.mxu0 %v135
    %549 = vmatpush.msra.mxu0 %v131
    %550 = vmatpush.msra.mxu0 %v127
    %551 = vmatpush.msra.mxu0 %v123
    %552 = vmatpush.msra.mxu0 %v119
    %553 = vmatpush.msra.mxu0 %v115
    %554 = vmatpush.msra.mxu0 %v111
    %555 = vmatpush.msra.mxu0 %v107
    %556 = vmatpush.msra.mxu0 %v103
    %557 = vmatmul.f32.gmra.mxu0 %v397
    %v558 = vpop.f32.mrf.mxu0
    %v559 = vadd.f32 %v539, %v558
    %560 = vdwg.mxu0
    %v561 = vxor.u32 %v439, 2147483648
    %v562 = vmul.f32 %v561, 1.442695
    %v563 = vpow.pop %v562
    %v564 = vadd.f32 %v563, 1.0
    %v565 = vrcp.pop %v564
    %v566 = vmul.f32 %v564, %v565
    %v567 = vsub.f32 1.0, %v566
    %v568 = vmul.f32 %v565, %v567
    %v569 = vadd.f32 %v565, %v568
    %vm570 = vweird.f32 %v564
    %vm571 = vweird.f32 %v565
    %vm572 = vmor %vm570, %vm571
    %v573 = vsel %vm572, %v565, %v569
    %v574 = vand.u32 2147483647, %v564
    %vm575 = vcmp.eq.f32.partialorder %v574, 8.507059e+37
    %v576 = vand.u32 %v564, 2147483648
    %v577 = vor.u32 1.1754944e-38, %v576
    %v578 = vsel %vm575, %v577, %v573
    %v579 = vmul.f32 1.0, %v578
    %v580 = vxor.u32 %v479, 2147483648
    %v581 = vmul.f32 %v580, 1.442695
    %v582 = vpow.pop %v581
    %v583 = vadd.f32 %v582, 1.0
    %v584 = vrcp.pop %v583
    %v585 = vmul.f32 %v583, %v584
    %v586 = vsub.f32 1.0, %v585
    %v587 = vmul.f32 %v584, %v586
    %v588 = vadd.f32 %v584, %v587
    %vm589 = vweird.f32 %v583
    %vm590 = vweird.f32 %v584
    %vm591 = vmor %vm589, %vm590
    %v592 = vsel %vm591, %v584, %v588
    %v593 = vand.u32 2147483647, %v583
    %vm594 = vcmp.eq.f32.partialorder %v593, 8.507059e+37
    %v595 = vand.u32 %v583, 2147483648
    %v596 = vor.u32 1.1754944e-38, %v595
    %v597 = vsel %vm594, %v596, %v592
    %v598 = vmul.f32 1.0, %v597
    %v599 = vtanh.pop %v519
    %v600 = vxor.u32 %v559, 2147483648
    %v601 = vmul.f32 %v600, 1.442695
    %v602 = vpow.pop %v601
    %v603 = vadd.f32 %v602, 1.0
    %v604 = vrcp.pop %v603
    %v605 = vmul.f32 %v603, %v604
    %v606 = vsub.f32 1.0, %v605
    %v607 = vmul.f32 %v604, %v606
    %v608 = vadd.f32 %v604, %v607
    %vm609 = vweird.f32 %v603
    %vm610 = vweird.f32 %v604
    %vm611 = vmor %vm609, %vm610
    %v612 = vsel %vm611, %v604, %v608
    %v613 = vand.u32 2147483647, %v603
    %vm614 = vcmp.eq.f32.partialorder %v613, 8.507059e+37
    %v615 = vand.u32 %v603, 2147483648
    %v616 = vor.u32 1.1754944e-38, %v615
    %v617 = vsel %vm614, %v616, %v612
    %v618 = vmul.f32 1.0, %v617
    %v619 = vmul.f32 %v598, %v395
    %v620 = vmul.f32 %v579, %v599
    %v621 = vadd.f32 %v619, %v620
    %v622 = vtanh.pop %v621
    %v623 = vmul.f32 %v618, %v622
    %624 = vst [vmem:[#allocation2 + $0x2] sm:$0x3] %v623
    %s625 = scalar_lea.vmem %s0, 4
    %v626 = vld [vmem:[%s625] sm:$0x3]
    %627 = vmatpush.msra.mxu0 %v96
    %628 = vmatpush.msra.mxu0 %v92
    %629 = vmatpush.msra.mxu0 %v88
    %630 = vmatpush.msra.mxu0 %v84
    %631 = vmatpush.msra.mxu0 %v80
    %632 = vmatpush.msra.mxu0 %v76
    %633 = vmatpush.msra.mxu0 %v72
    %634 = vmatpush.msra.mxu0 %v68
    %635 = vmatpush.msra.mxu0 %v64
    %636 = vmatpush.msra.mxu0 %v60
    %637 = vmatpush.msra.mxu0 %v56
    %638 = vmatpush.msra.mxu0 %v52
    %639 = vmatpush.msra.mxu0 %v48
    %640 = vmatpush.msra.mxu0 %v44
    %641 = vmatpush.msra.mxu0 %v40
    %642 = vmatpush.msra.mxu0 %v36
    %643 = vmatmul.f32.gmra.mxu0 %v626
    %v644 = vpop.f32.mrf.mxu0
    %v645 = vadd.f32 %v167, %v644
    %646 = vdwg.mxu0
    %647 = vmatpush.msra.mxu0 %v160
    %648 = vmatpush.msra.mxu0 %v156
    %649 = vmatpush.msra.mxu0 %v152
    %650 = vmatpush.msra.mxu0 %v148
    %651 = vmatpush.msra.mxu0 %v144
    %652 = vmatpush.msra.mxu0 %v140
    %653 = vmatpush.msra.mxu0 %v136
    %654 = vmatpush.msra.mxu0 %v132
    %655 = vmatpush.msra.mxu0 %v128
    %656 = vmatpush.msra.mxu0 %v124
    %657 = vmatpush.msra.mxu0 %v120
    %658 = vmatpush.msra.mxu0 %v116
    %659 = vmatpush.msra.mxu0 %v112
    %660 = vmatpush.msra.mxu0 %v108
    %661 = vmatpush.msra.mxu0 %v104
    %662 = vmatpush.msra.mxu0 %v100
    %663 = vmatmul.f32.gmra.mxu0 %v623
    %v664 = vpop.f32.mrf.mxu0
    %v665 = vadd.f32 %v645, %v664
    %666 = vdwg.mxu0
    %667 = vmatpush.msra.mxu0 %v97
    %668 = vmatpush.msra.mxu0 %v93
    %669 = vmatpush.msra.mxu0 %v89
    %670 = vmatpush.msra.mxu0 %v85
    %671 = vmatpush.msra.mxu0 %v81
    %672 = vmatpush.msra.mxu0 %v77
    %673 = vmatpush.msra.mxu0 %v73
    %674 = vmatpush.msra.mxu0 %v69
    %675 = vmatpush.msra.mxu0 %v65
    %676 = vmatpush.msra.mxu0 %v61
    %677 = vmatpush.msra.mxu0 %v57
    %678 = vmatpush.msra.mxu0 %v53
    %679 = vmatpush.msra.mxu0 %v49
    %680 = vmatpush.msra.mxu0 %v45
    %681 = vmatpush.msra.mxu0 %v41
    %682 = vmatpush.msra.mxu0 %v37
    %683 = vmatmul.f32.gmra.mxu0 %v626
    %v684 = vpop.f32.mrf.mxu0
    %v685 = vadd.f32 %v168, %v684
    %686 = vdwg.mxu0
    %687 = vmatpush.msra.mxu0 %v161
    %688 = vmatpush.msra.mxu0 %v157
    %689 = vmatpush.msra.mxu0 %v153
    %690 = vmatpush.msra.mxu0 %v149
    %691 = vmatpush.msra.mxu0 %v145
    %692 = vmatpush.msra.mxu0 %v141
    %693 = vmatpush.msra.mxu0 %v137
    %694 = vmatpush.msra.mxu0 %v133
    %695 = vmatpush.msra.mxu0 %v129
    %696 = vmatpush.msra.mxu0 %v125
    %697 = vmatpush.msra.mxu0 %v121
    %698 = vmatpush.msra.mxu0 %v117
    %699 = vmatpush.msra.mxu0 %v113
    %700 = vmatpush.msra.mxu0 %v109
    %701 = vmatpush.msra.mxu0 %v105
    %702 = vmatpush.msra.mxu0 %v101
    %703 = vmatmul.f32.gmra.mxu0 %v623
    %v704 = vpop.f32.mrf.mxu0
    %v705 = vadd.f32 %v685, %v704
    %706 = vdwg.mxu0
    %707 = vmatpush.msra.mxu0 %v98
    %708 = vmatpush.msra.mxu0 %v94
    %709 = vmatpush.msra.mxu0 %v90
    %710 = vmatpush.msra.mxu0 %v86
    %711 = vmatpush.msra.mxu0 %v82
    %712 = vmatpush.msra.mxu0 %v78
    %713 = vmatpush.msra.mxu0 %v74
    %714 = vmatpush.msra.mxu0 %v70
    %715 = vmatpush.msra.mxu0 %v66
    %716 = vmatpush.msra.mxu0 %v62
    %717 = vmatpush.msra.mxu0 %v58
    %718 = vmatpush.msra.mxu0 %v54
    %719 = vmatpush.msra.mxu0 %v50
    %720 = vmatpush.msra.mxu0 %v46
    %721 = vmatpush.msra.mxu0 %v42
    %722 = vmatpush.msra.mxu0 %v38
    %723 = vmatmul.f32.gmra.mxu0 %v626
    %v724 = vpop.f32.mrf.mxu0
    %v725 = vadd.f32 %v169, %v724
    %726 = vdwg.mxu0
    %727 = vmatpush.msra.mxu0 %v162
    %728 = vmatpush.msra.mxu0 %v158
    %729 = vmatpush.msra.mxu0 %v154
    %730 = vmatpush.msra.mxu0 %v150
    %731 = vmatpush.msra.mxu0 %v146
    %732 = vmatpush.msra.mxu0 %v142
    %733 = vmatpush.msra.mxu0 %v138
    %734 = vmatpush.msra.mxu0 %v134
    %735 = vmatpush.msra.mxu0 %v130
    %736 = vmatpush.msra.mxu0 %v126
    %737 = vmatpush.msra.mxu0 %v122
    %738 = vmatpush.msra.mxu0 %v118
    %739 = vmatpush.msra.mxu0 %v114
    %740 = vmatpush.msra.mxu0 %v110
    %741 = vmatpush.msra.mxu0 %v106
    %742 = vmatpush.msra.mxu0 %v102
    %743 = vmatmul.f32.gmra.mxu0 %v623
    %v744 = vpop.f32.mrf.mxu0
    %v745 = vadd.f32 %v725, %v744
    %746 = vdwg.mxu0
    %747 = vmatpush.msra.mxu0 %v99
    %748 = vmatpush.msra.mxu0 %v95
    %749 = vmatpush.msra.mxu0 %v91
    %750 = vmatpush.msra.mxu0 %v87
    %751 = vmatpush.msra.mxu0 %v83
    %752 = vmatpush.msra.mxu0 %v79
    %753 = vmatpush.msra.mxu0 %v75
    %754 = vmatpush.msra.mxu0 %v71
    %755 = vmatpush.msra.mxu0 %v67
    %756 = vmatpush.msra.mxu0 %v63
    %757 = vmatpush.msra.mxu0 %v59
    %758 = vmatpush.msra.mxu0 %v55
    %759 = vmatpush.msra.mxu0 %v51
    %760 = vmatpush.msra.mxu0 %v47
    %761 = vmatpush.msra.mxu0 %v43
    %762 = vmatpush.msra.mxu0 %v39
    %763 = vmatmul.f32.gmra.mxu0 %v626
    %v764 = vpop.f32.mrf.mxu0
    %v765 = vadd.f32 %v170, %v764
    %766 = vdwg.mxu0
    %767 = vmatpush.msra.mxu0 %v163
    %768 = vmatpush.msra.mxu0 %v159
    %769 = vmatpush.msra.mxu0 %v155
    %770 = vmatpush.msra.mxu0 %v151
    %771 = vmatpush.msra.mxu0 %v147
    %772 = vmatpush.msra.mxu0 %v143
    %773 = vmatpush.msra.mxu0 %v139
    %774 = vmatpush.msra.mxu0 %v135
    %775 = vmatpush.msra.mxu0 %v131
    %776 = vmatpush.msra.mxu0 %v127
    %777 = vmatpush.msra.mxu0 %v123
    %778 = vmatpush.msra.mxu0 %v119
    %779 = vmatpush.msra.mxu0 %v115
    %780 = vmatpush.msra.mxu0 %v111
    %781 = vmatpush.msra.mxu0 %v107
    %782 = vmatpush.msra.mxu0 %v103
    %783 = vmatmul.f32.gmra.mxu0 %v623
    %v784 = vpop.f32.mrf.mxu0
    %v785 = vadd.f32 %v765, %v784
    %786 = vdwg.mxu0
    %v787 = vxor.u32 %v665, 2147483648
    %v788 = vmul.f32 %v787, 1.442695
    %v789 = vpow.pop %v788
    %v790 = vadd.f32 %v789, 1.0
    %v791 = vrcp.pop %v790
    %v792 = vmul.f32 %v790, %v791
    %v793 = vsub.f32 1.0, %v792
    %v794 = vmul.f32 %v791, %v793
    %v795 = vadd.f32 %v791, %v794
    %vm796 = vweird.f32 %v790
    %vm797 = vweird.f32 %v791
    %vm798 = vmor %vm796, %vm797
    %v799 = vsel %vm798, %v791, %v795
    %v800 = vand.u32 2147483647, %v790
    %vm801 = vcmp.eq.f32.partialorder %v800, 8.507059e+37
    %v802 = vand.u32 %v790, 2147483648
    %v803 = vor.u32 1.1754944e-38, %v802
    %v804 = vsel %vm801, %v803, %v799
    %v805 = vmul.f32 1.0, %v804
    %v806 = vxor.u32 %v705, 2147483648
    %v807 = vmul.f32 %v806, 1.442695
    %v808 = vpow.pop %v807
    %v809 = vadd.f32 %v808, 1.0
    %v810 = vrcp.pop %v809
    %v811 = vmul.f32 %v809, %v810
    %v812 = vsub.f32 1.0, %v811
    %v813 = vmul.f32 %v810, %v812
    %v814 = vadd.f32 %v810, %v813
    %vm815 = vweird.f32 %v809
    %vm816 = vweird.f32 %v810
    %vm817 = vmor %vm815, %vm816
    %v818 = vsel %vm817, %v810, %v814
    %v819 = vand.u32 2147483647, %v809
    %vm820 = vcmp.eq.f32.partialorder %v819, 8.507059e+37
    %v821 = vand.u32 %v809, 2147483648
    %v822 = vor.u32 1.1754944e-38, %v821
    %v823 = vsel %vm820, %v822, %v818
    %v824 = vmul.f32 1.0, %v823
    %v825 = vtanh.pop %v745
    %v826 = vxor.u32 %v785, 2147483648
    %v827 = vmul.f32 %v826, 1.442695
    %v828 = vpow.pop %v827
    %v829 = vadd.f32 %v828, 1.0
    %v830 = vrcp.pop %v829
    %v831 = vmul.f32 %v829, %v830
    %v832 = vsub.f32 1.0, %v831
    %v833 = vmul.f32 %v830, %v832
    %v834 = vadd.f32 %v830, %v833
    %vm835 = vweird.f32 %v829
    %vm836 = vweird.f32 %v830
    %vm837 = vmor %vm835, %vm836
    %v838 = vsel %vm837, %v830, %v834
    %v839 = vand.u32 2147483647, %v829
    %vm840 = vcmp.eq.f32.partialorder %v839, 8.507059e+37
    %v841 = vand.u32 %v829, 2147483648
    %v842 = vor.u32 1.1754944e-38, %v841
    %v843 = vsel %vm840, %v842, %v838
    %v844 = vmul.f32 1.0, %v843
    %v845 = vmul.f32 %v824, %v621
    %v846 = vmul.f32 %v805, %v825
    %v847 = vadd.f32 %v845, %v846
    %v848 = vtanh.pop %v847
    %v849 = vmul.f32 %v844, %v848
    %850 = vst [vmem:[#allocation2 + $0x4] sm:$0x3] %v849
    %s851 = scalar_lea.vmem %s0, 6
    %v852 = vld [vmem:[%s851] sm:$0x3]
    %853 = vmatpush.msra.mxu0 %v96
    %854 = vmatpush.msra.mxu0 %v92
    %855 = vmatpush.msra.mxu0 %v88
    %856 = vmatpush.msra.mxu0 %v84
    %857 = vmatpush.msra.mxu0 %v80
    %858 = vmatpush.msra.mxu0 %v76
    %859 = vmatpush.msra.mxu0 %v72
    %860 = vmatpush.msra.mxu0 %v68
    %861 = vmatpush.msra.mxu0 %v64
    %862 = vmatpush.msra.mxu0 %v60
    %863 = vmatpush.msra.mxu0 %v56
    %864 = vmatpush.msra.mxu0 %v52
    %865 = vmatpush.msra.mxu0 %v48
    %866 = vmatpush.msra.mxu0 %v44
    %867 = vmatpush.msra.mxu0 %v40
    %868 = vmatpush.msra.mxu0 %v36
    %869 = vmatmul.f32.gmra.mxu0 %v852
    %v870 = vpop.f32.mrf.mxu0
    %v871 = vadd.f32 %v167, %v870
    %872 = vdwg.mxu0
    %873 = vmatpush.msra.mxu0 %v160
    %874 = vmatpush.msra.mxu0 %v156
    %875 = vmatpush.msra.mxu0 %v152
    %876 = vmatpush.msra.mxu0 %v148
    %877 = vmatpush.msra.mxu0 %v144
    %878 = vmatpush.msra.mxu0 %v140
    %879 = vmatpush.msra.mxu0 %v136
    %880 = vmatpush.msra.mxu0 %v132
    %881 = vmatpush.msra.mxu0 %v128
    %882 = vmatpush.msra.mxu0 %v124
    %883 = vmatpush.msra.mxu0 %v120
    %884 = vmatpush.msra.mxu0 %v116
    %885 = vmatpush.msra.mxu0 %v112
    %886 = vmatpush.msra.mxu0 %v108
    %887 = vmatpush.msra.mxu0 %v104
    %888 = vmatpush.msra.mxu0 %v100
    %889 = vmatmul.f32.gmra.mxu0 %v849
    %v890 = vpop.f32.mrf.mxu0
    %v891 = vadd.f32 %v871, %v890
    %892 = vdwg.mxu0
    %893 = vmatpush.msra.mxu0 %v97
    %894 = vmatpush.msra.mxu0 %v93
    %895 = vmatpush.msra.mxu0 %v89
    %896 = vmatpush.msra.mxu0 %v85
    %897 = vmatpush.msra.mxu0 %v81
    %898 = vmatpush.msra.mxu0 %v77
    %899 = vmatpush.msra.mxu0 %v73
    %900 = vmatpush.msra.mxu0 %v69
    %901 = vmatpush.msra.mxu0 %v65
    %902 = vmatpush.msra.mxu0 %v61
    %903 = vmatpush.msra.mxu0 %v57
    %904 = vmatpush.msra.mxu0 %v53
    %905 = vmatpush.msra.mxu0 %v49
    %906 = vmatpush.msra.mxu0 %v45
    %907 = vmatpush.msra.mxu0 %v41
    %908 = vmatpush.msra.mxu0 %v37
    %909 = vmatmul.f32.gmra.mxu0 %v852
    %v910 = vpop.f32.mrf.mxu0
    %v911 = vadd.f32 %v168, %v910
    %912 = vdwg.mxu0
    %913 = vmatpush.msra.mxu0 %v161
    %914 = vmatpush.msra.mxu0 %v157
    %915 = vmatpush.msra.mxu0 %v153
    %916 = vmatpush.msra.mxu0 %v149
    %917 = vmatpush.msra.mxu0 %v145
    %918 = vmatpush.msra.mxu0 %v141
    %919 = vmatpush.msra.mxu0 %v137
    %920 = vmatpush.msra.mxu0 %v133
    %921 = vmatpush.msra.mxu0 %v129
    %922 = vmatpush.msra.mxu0 %v125
    %923 = vmatpush.msra.mxu0 %v121
    %924 = vmatpush.msra.mxu0 %v117
    %925 = vmatpush.msra.mxu0 %v113
    %926 = vmatpush.msra.mxu0 %v109
    %927 = vmatpush.msra.mxu0 %v105
    %928 = vmatpush.msra.mxu0 %v101
    %929 = vmatmul.f32.gmra.mxu0 %v849
    %v930 = vpop.f32.mrf.mxu0
    %v931 = vadd.f32 %v911, %v930
    %932 = vdwg.mxu0
    %933 = vmatpush.msra.mxu0 %v98
    %934 = vmatpush.msra.mxu0 %v94
    %935 = vmatpush.msra.mxu0 %v90
    %936 = vmatpush.msra.mxu0 %v86
    %937 = vmatpush.msra.mxu0 %v82
    %938 = vmatpush.msra.mxu0 %v78
    %939 = vmatpush.msra.mxu0 %v74
    %940 = vmatpush.msra.mxu0 %v70
    %941 = vmatpush.msra.mxu0 %v66
    %942 = vmatpush.msra.mxu0 %v62
    %943 = vmatpush.msra.mxu0 %v58
    %944 = vmatpush.msra.mxu0 %v54
    %945 = vmatpush.msra.mxu0 %v50
    %946 = vmatpush.msra.mxu0 %v46
    %947 = vmatpush.msra.mxu0 %v42
    %948 = vmatpush.msra.mxu0 %v38
    %949 = vmatmul.f32.gmra.mxu0 %v852
    %v950 = vpop.f32.mrf.mxu0
    %v951 = vadd.f32 %v169, %v950
    %952 = vdwg.mxu0
    %953 = vmatpush.msra.mxu0 %v162
    %954 = vmatpush.msra.mxu0 %v158
    %955 = vmatpush.msra.mxu0 %v154
    %956 = vmatpush.msra.mxu0 %v150
    %957 = vmatpush.msra.mxu0 %v146
    %958 = vmatpush.msra.mxu0 %v142
    %959 = vmatpush.msra.mxu0 %v138
    %960 = vmatpush.msra.mxu0 %v134
    %961 = vmatpush.msra.mxu0 %v130
    %962 = vmatpush.msra.mxu0 %v126
    %963 = vmatpush.msra.mxu0 %v122
    %964 = vmatpush.msra.mxu0 %v118
    %965 = vmatpush.msra.mxu0 %v114
    %966 = vmatpush.msra.mxu0 %v110
    %967 = vmatpush.msra.mxu0 %v106
    %968 = vmatpush.msra.mxu0 %v102
    %969 = vmatmul.f32.gmra.mxu0 %v849
    %v970 = vpop.f32.mrf.mxu0
    %v971 = vadd.f32 %v951, %v970
    %972 = vdwg.mxu0
    %973 = vmatpush.msra.mxu0 %v99
    %974 = vmatpush.msra.mxu0 %v95
    %975 = vmatpush.msra.mxu0 %v91
    %976 = vmatpush.msra.mxu0 %v87
    %977 = vmatpush.msra.mxu0 %v83
    %978 = vmatpush.msra.mxu0 %v79
    %979 = vmatpush.msra.mxu0 %v75
    %980 = vmatpush.msra.mxu0 %v71
    %981 = vmatpush.msra.mxu0 %v67
    %982 = vmatpush.msra.mxu0 %v63
    %983 = vmatpush.msra.mxu0 %v59
    %984 = vmatpush.msra.mxu0 %v55
    %985 = vmatpush.msra.mxu0 %v51
    %986 = vmatpush.msra.mxu0 %v47
    %987 = vmatpush.msra.mxu0 %v43
    %988 = vmatpush.msra.mxu0 %v39
    %989 = vmatmul.f32.gmra.mxu0 %v852
    %v990 = vpop.f32.mrf.mxu0
    %v991 = vadd.f32 %v170, %v990
    %992 = vdwg.mxu0
    %993 = vmatpush.msra.mxu0 %v163
    %994 = vmatpush.msra.mxu0 %v159
    %995 = vmatpush.msra.mxu0 %v155
    %996 = vmatpush.msra.mxu0 %v151
    %997 = vmatpush.msra.mxu0 %v147
    %998 = vmatpush.msra.mxu0 %v143
    %999 = vmatpush.msra.mxu0 %v139
    %1000 = vmatpush.msra.mxu0 %v135
    %1001 = vmatpush.msra.mxu0 %v131
    %1002 = vmatpush.msra.mxu0 %v127
    %1003 = vmatpush.msra.mxu0 %v123
    %1004 = vmatpush.msra.mxu0 %v119
    %1005 = vmatpush.msra.mxu0 %v115
    %1006 = vmatpush.msra.mxu0 %v111
    %1007 = vmatpush.msra.mxu0 %v107
    %1008 = vmatpush.msra.mxu0 %v103
    %1009 = vmatmul.f32.gmra.mxu0 %v849
    %v1010 = vpop.f32.mrf.mxu0
    %v1011 = vadd.f32 %v991, %v1010
    %1012 = vdwg.mxu0
    %v1013 = vxor.u32 %v891, 2147483648
    %v1014 = vmul.f32 %v1013, 1.442695
    %v1015 = vpow.pop %v1014
    %v1016 = vadd.f32 %v1015, 1.0
    %v1017 = vrcp.pop %v1016
    %v1018 = vmul.f32 %v1016, %v1017
    %v1019 = vsub.f32 1.0, %v1018
    %v1020 = vmul.f32 %v1017, %v1019
    %v1021 = vadd.f32 %v1017, %v1020
    %vm1022 = vweird.f32 %v1016
    %vm1023 = vweird.f32 %v1017
    %vm1024 = vmor %vm1022, %vm1023
    %v1025 = vsel %vm1024, %v1017, %v1021
    %v1026 = vand.u32 2147483647, %v1016
    %vm1027 = vcmp.eq.f32.partialorder %v1026, 8.507059e+37
    %v1028 = vand.u32 %v1016, 2147483648
    %v1029 = vor.u32 1.1754944e-38, %v1028
    %v1030 = vsel %vm1027, %v1029, %v1025
    %v1031 = vmul.f32 1.0, %v1030
    %v1032 = vxor.u32 %v931, 2147483648
    %v1033 = vmul.f32 %v1032, 1.442695
    %v1034 = vpow.pop %v1033
    %v1035 = vadd.f32 %v1034, 1.0
    %v1036 = vrcp.pop %v1035
    %v1037 = vmul.f32 %v1035, %v1036
    %v1038 = vsub.f32 1.0, %v1037
    %v1039 = vmul.f32 %v1036, %v1038
    %v1040 = vadd.f32 %v1036, %v1039
    %vm1041 = vweird.f32 %v1035
    %vm1042 = vweird.f32 %v1036
    %vm1043 = vmor %vm1041, %vm1042
    %v1044 = vsel %vm1043, %v1036, %v1040
    %v1045 = vand.u32 2147483647, %v1035
    %vm1046 = vcmp.eq.f32.partialorder %v1045, 8.507059e+37
    %v1047 = vand.u32 %v1035, 2147483648
    %v1048 = vor.u32 1.1754944e-38, %v1047
    %v1049 = vsel %vm1046, %v1048, %v1044
    %v1050 = vmul.f32 1.0, %v1049
    %v1051 = vtanh.pop %v971
    %v1052 = vxor.u32 %v1011, 2147483648
    %v1053 = vmul.f32 %v1052, 1.442695
    %v1054 = vpow.pop %v1053
    %v1055 = vadd.f32 %v1054, 1.0
    %v1056 = vrcp.pop %v1055
    %v1057 = vmul.f32 %v1055, %v1056
    %v1058 = vsub.f32 1.0, %v1057
    %v1059 = vmul.f32 %v1056, %v1058
    %v1060 = vadd.f32 %v1056, %v1059
    %vm1061 = vweird.f32 %v1055
    %vm1062 = vweird.f32 %v1056
    %vm1063 = vmor %vm1061, %vm1062
    %v1064 = vsel %vm1063, %v1056, %v1060
    %v1065 = vand.u32 2147483647, %v1055
    %vm1066 = vcmp.eq.f32.partialorder %v1065, 8.507059e+37
    %v1067 = vand.u32 %v1055, 2147483648
    %v1068 = vor.u32 1.1754944e-38, %v1067
    %v1069 = vsel %vm1066, %v1068, %v1064
    %v1070 = vmul.f32 1.0, %v1069
    %v1071 = vmul.f32 %v1050, %v847
    %v1072 = vmul.f32 %v1031, %v1051
    %v1073 = vadd.f32 %v1071, %v1072
    %v1074 = vtanh.pop %v1073
    %v1075 = vmul.f32 %v1070, %v1074
    %1076 = vst [vmem:[#allocation2 + $0x6] sm:$0x3] %v1075
    %s1077 = scalar_lea.vmem %s0, 8
    %v1078 = vld [vmem:[%s1077] sm:$0x3]
    %1079 = vmatpush.msra.mxu0 %v96
    %1080 = vmatpush.msra.mxu0 %v92
    %1081 = vmatpush.msra.mxu0 %v88
    %1082 = vmatpush.msra.mxu0 %v84
    %1083 = vmatpush.msra.mxu0 %v80
    %1084 = vmatpush.msra.mxu0 %v76
    %1085 = vmatpush.msra.mxu0 %v72
    %1086 = vmatpush.msra.mxu0 %v68
    %1087 = vmatpush.msra.mxu0 %v64
    %1088 = vmatpush.msra.mxu0 %v60
    %1089 = vmatpush.msra.mxu0 %v56
    %1090 = vmatpush.msra.mxu0 %v52
    %1091 = vmatpush.msra.mxu0 %v48
    %1092 = vmatpush.msra.mxu0 %v44
    %1093 = vmatpush.msra.mxu0 %v40
    %1094 = vmatpush.msra.mxu0 %v36
    %1095 = vmatmul.f32.gmra.mxu0 %v1078
    %v1096 = vpop.f32.mrf.mxu0
    %v1097 = vadd.f32 %v167, %v1096
    %1098 = vdwg.mxu0
    %1099 = vmatpush.msra.mxu0 %v160
    %1100 = vmatpush.msra.mxu0 %v156
    %1101 = vmatpush.msra.mxu0 %v152
    %1102 = vmatpush.msra.mxu0 %v148
    %1103 = vmatpush.msra.mxu0 %v144
    %1104 = vmatpush.msra.mxu0 %v140
    %1105 = vmatpush.msra.mxu0 %v136
    %1106 = vmatpush.msra.mxu0 %v132
    %1107 = vmatpush.msra.mxu0 %v128
    %1108 = vmatpush.msra.mxu0 %v124
    %1109 = vmatpush.msra.mxu0 %v120
    %1110 = vmatpush.msra.mxu0 %v116
    %1111 = vmatpush.msra.mxu0 %v112
    %1112 = vmatpush.msra.mxu0 %v108
    %1113 = vmatpush.msra.mxu0 %v104
    %1114 = vmatpush.msra.mxu0 %v100
    %1115 = vmatmul.f32.gmra.mxu0 %v1075
    %v1116 = vpop.f32.mrf.mxu0
    %v1117 = vadd.f32 %v1097, %v1116
    %1118 = vdwg.mxu0
    %1119 = vmatpush.msra.mxu0 %v97
    %1120 = vmatpush.msra.mxu0 %v93
    %1121 = vmatpush.msra.mxu0 %v89
    %1122 = vmatpush.msra.mxu0 %v85
    %1123 = vmatpush.msra.mxu0 %v81
    %1124 = vmatpush.msra.mxu0 %v77
    %1125 = vmatpush.msra.mxu0 %v73
    %1126 = vmatpush.msra.mxu0 %v69
    %1127 = vmatpush.msra.mxu0 %v65
    %1128 = vmatpush.msra.mxu0 %v61
    %1129 = vmatpush.msra.mxu0 %v57
    %1130 = vmatpush.msra.mxu0 %v53
    %1131 = vmatpush.msra.mxu0 %v49
    %1132 = vmatpush.msra.mxu0 %v45
    %1133 = vmatpush.msra.mxu0 %v41
    %1134 = vmatpush.msra.mxu0 %v37
    %1135 = vmatmul.f32.gmra.mxu0 %v1078
    %v1136 = vpop.f32.mrf.mxu0
    %v1137 = vadd.f32 %v168, %v1136
    %1138 = vdwg.mxu0
    %1139 = vmatpush.msra.mxu0 %v161
    %1140 = vmatpush.msra.mxu0 %v157
    %1141 = vmatpush.msra.mxu0 %v153
    %1142 = vmatpush.msra.mxu0 %v149
    %1143 = vmatpush.msra.mxu0 %v145
    %1144 = vmatpush.msra.mxu0 %v141
    %1145 = vmatpush.msra.mxu0 %v137
    %1146 = vmatpush.msra.mxu0 %v133
    %1147 = vmatpush.msra.mxu0 %v129
    %1148 = vmatpush.msra.mxu0 %v125
    %1149 = vmatpush.msra.mxu0 %v121
    %1150 = vmatpush.msra.mxu0 %v117
    %1151 = vmatpush.msra.mxu0 %v113
    %1152 = vmatpush.msra.mxu0 %v109
    %1153 = vmatpush.msra.mxu0 %v105
    %1154 = vmatpush.msra.mxu0 %v101
    %1155 = vmatmul.f32.gmra.mxu0 %v1075
    %v1156 = vpop.f32.mrf.mxu0
    %v1157 = vadd.f32 %v1137, %v1156
    %1158 = vdwg.mxu0
    %1159 = vmatpush.msra.mxu0 %v98
    %1160 = vmatpush.msra.mxu0 %v94
    %1161 = vmatpush.msra.mxu0 %v90
    %1162 = vmatpush.msra.mxu0 %v86
    %1163 = vmatpush.msra.mxu0 %v82
    %1164 = vmatpush.msra.mxu0 %v78
    %1165 = vmatpush.msra.mxu0 %v74
    %1166 = vmatpush.msra.mxu0 %v70
    %1167 = vmatpush.msra.mxu0 %v66
    %1168 = vmatpush.msra.mxu0 %v62
    %1169 = vmatpush.msra.mxu0 %v58
    %1170 = vmatpush.msra.mxu0 %v54
    %1171 = vmatpush.msra.mxu0 %v50
    %1172 = vmatpush.msra.mxu0 %v46
    %1173 = vmatpush.msra.mxu0 %v42
    %1174 = vmatpush.msra.mxu0 %v38
    %1175 = vmatmul.f32.gmra.mxu0 %v1078
    %v1176 = vpop.f32.mrf.mxu0
    %v1177 = vadd.f32 %v169, %v1176
    %1178 = vdwg.mxu0
    %1179 = vmatpush.msra.mxu0 %v162
    %1180 = vmatpush.msra.mxu0 %v158
    %1181 = vmatpush.msra.mxu0 %v154
    %1182 = vmatpush.msra.mxu0 %v150
    %1183 = vmatpush.msra.mxu0 %v146
    %1184 = vmatpush.msra.mxu0 %v142
    %1185 = vmatpush.msra.mxu0 %v138
    %1186 = vmatpush.msra.mxu0 %v134
    %1187 = vmatpush.msra.mxu0 %v130
    %1188 = vmatpush.msra.mxu0 %v126
    %1189 = vmatpush.msra.mxu0 %v122
    %1190 = vmatpush.msra.mxu0 %v118
    %1191 = vmatpush.msra.mxu0 %v114
    %1192 = vmatpush.msra.mxu0 %v110
    %1193 = vmatpush.msra.mxu0 %v106
    %1194 = vmatpush.msra.mxu0 %v102
    %1195 = vmatmul.f32.gmra.mxu0 %v1075
    %v1196 = vpop.f32.mrf.mxu0
    %v1197 = vadd.f32 %v1177, %v1196
    %1198 = vdwg.mxu0
    %1199 = vmatpush.msra.mxu0 %v99
    %1200 = vmatpush.msra.mxu0 %v95
    %1201 = vmatpush.msra.mxu0 %v91
    %1202 = vmatpush.msra.mxu0 %v87
    %1203 = vmatpush.msra.mxu0 %v83
    %1204 = vmatpush.msra.mxu0 %v79
    %1205 = vmatpush.msra.mxu0 %v75
    %1206 = vmatpush.msra.mxu0 %v71
    %1207 = vmatpush.msra.mxu0 %v67
    %1208 = vmatpush.msra.mxu0 %v63
    %1209 = vmatpush.msra.mxu0 %v59
    %1210 = vmatpush.msra.mxu0 %v55
    %1211 = vmatpush.msra.mxu0 %v51
    %1212 = vmatpush.msra.mxu0 %v47
    %1213 = vmatpush.msra.mxu0 %v43
    %1214 = vmatpush.msra.mxu0 %v39
    %1215 = vmatmul.f32.gmra.mxu0 %v1078
    %v1216 = vpop.f32.mrf.mxu0
    %v1217 = vadd.f32 %v170, %v1216
    %1218 = vdwg.mxu0
    %1219 = vmatpush.msra.mxu0 %v163
    %1220 = vmatpush.msra.mxu0 %v159
    %1221 = vmatpush.msra.mxu0 %v155
    %1222 = vmatpush.msra.mxu0 %v151
    %1223 = vmatpush.msra.mxu0 %v147
    %1224 = vmatpush.msra.mxu0 %v143
    %1225 = vmatpush.msra.mxu0 %v139
    %1226 = vmatpush.msra.mxu0 %v135
    %1227 = vmatpush.msra.mxu0 %v131
    %1228 = vmatpush.msra.mxu0 %v127
    %1229 = vmatpush.msra.mxu0 %v123
    %1230 = vmatpush.msra.mxu0 %v119
    %1231 = vmatpush.msra.mxu0 %v115
    %1232 = vmatpush.msra.mxu0 %v111
    %1233 = vmatpush.msra.mxu0 %v107
    %1234 = vmatpush.msra.mxu0 %v103
    %1235 = vmatmul.f32.gmra.mxu0 %v1075
    %v1236 = vpop.f32.mrf.mxu0
    %v1237 = vadd.f32 %v1217, %v1236
    %1238 = vdwg.mxu0
    %v1239 = vxor.u32 %v1117, 2147483648
    %v1240 = vmul.f32 %v1239, 1.442695
    %v1241 = vpow.pop %v1240
    %v1242 = vadd.f32 %v1241, 1.0
    %v1243 = vrcp.pop %v1242
    %v1244 = vmul.f32 %v1242, %v1243
    %v1245 = vsub.f32 1.0, %v1244
    %v1246 = vmul.f32 %v1243, %v1245
    %v1247 = vadd.f32 %v1243, %v1246
    %vm1248 = vweird.f32 %v1242
    %vm1249 = vweird.f32 %v1243
    %vm1250 = vmor %vm1248, %vm1249
    %v1251 = vsel %vm1250, %v1243, %v1247
    %v1252 = vand.u32 2147483647, %v1242
    %vm1253 = vcmp.eq.f32.partialorder %v1252, 8.507059e+37
    %v1254 = vand.u32 %v1242, 2147483648
    %v1255 = vor.u32 1.1754944e-38, %v1254
    %v1256 = vsel %vm1253, %v1255, %v1251
    %v1257 = vmul.f32 1.0, %v1256
    %v1258 = vxor.u32 %v1157, 2147483648
    %v1259 = vmul.f32 %v1258, 1.442695
    %v1260 = vpow.pop %v1259
    %v1261 = vadd.f32 %v1260, 1.0
    %v1262 = vrcp.pop %v1261
    %v1263 = vmul.f32 %v1261, %v1262
    %v1264 = vsub.f32 1.0, %v1263
    %v1265 = vmul.f32 %v1262, %v1264
    %v1266 = vadd.f32 %v1262, %v1265
    %vm1267 = vweird.f32 %v1261
    %vm1268 = vweird.f32 %v1262
    %vm1269 = vmor %vm1267, %vm1268
    %v1270 = vsel %vm1269, %v1262, %v1266
    %v1271 = vand.u32 2147483647, %v1261
    %vm1272 = vcmp.eq.f32.partialorder %v1271, 8.507059e+37
    %v1273 = vand.u32 %v1261, 2147483648
    %v1274 = vor.u32 1.1754944e-38, %v1273
    %v1275 = vsel %vm1272, %v1274, %v1270
    %v1276 = vmul.f32 1.0, %v1275
    %v1277 = vtanh.pop %v1197
    %v1278 = vxor.u32 %v1237, 2147483648
    %v1279 = vmul.f32 %v1278, 1.442695
    %v1280 = vpow.pop %v1279
    %v1281 = vadd.f32 %v1280, 1.0
    %v1282 = vrcp.pop %v1281
    %v1283 = vmul.f32 %v1281, %v1282
    %v1284 = vsub.f32 1.0, %v1283
    %v1285 = vmul.f32 %v1282, %v1284
    %v1286 = vadd.f32 %v1282, %v1285
    %vm1287 = vweird.f32 %v1281
    %vm1288 = vweird.f32 %v1282
    %vm1289 = vmor %vm1287, %vm1288
    %v1290 = vsel %vm1289, %v1282, %v1286
    %v1291 = vand.u32 2147483647, %v1281
    %vm1292 = vcmp.eq.f32.partialorder %v1291, 8.507059e+37
    %v1293 = vand.u32 %v1281, 2147483648
    %v1294 = vor.u32 1.1754944e-38, %v1293
    %v1295 = vsel %vm1292, %v1294, %v1290
    %v1296 = vmul.f32 1.0, %v1295
    %v1297 = vmul.f32 %v1276, %v1073
    %v1298 = vmul.f32 %v1257, %v1277
    %v1299 = vadd.f32 %v1297, %v1298
    %v1300 = vtanh.pop %v1299
    %v1301 = vmul.f32 %v1296, %v1300
    %1302 = vst [vmem:[#allocation2 + $0x8] sm:$0x3] %v1301
    %s1303 = scalar_lea.vmem %s0, 10
    %v1304 = vld [vmem:[%s1303] sm:$0x3]
    %1305 = vmatpush.msra.mxu0 %v96
    %1306 = vmatpush.msra.mxu0 %v92
    %1307 = vmatpush.msra.mxu0 %v88
    %1308 = vmatpush.msra.mxu0 %v84
    %1309 = vmatpush.msra.mxu0 %v80
    %1310 = vmatpush.msra.mxu0 %v76
    %1311 = vmatpush.msra.mxu0 %v72
    %1312 = vmatpush.msra.mxu0 %v68
    %1313 = vmatpush.msra.mxu0 %v64
    %1314 = vmatpush.msra.mxu0 %v60
    %1315 = vmatpush.msra.mxu0 %v56
    %1316 = vmatpush.msra.mxu0 %v52
    %1317 = vmatpush.msra.mxu0 %v48
    %1318 = vmatpush.msra.mxu0 %v44
    %1319 = vmatpush.msra.mxu0 %v40
    %1320 = vmatpush.msra.mxu0 %v36
    %1321 = vmatmul.f32.gmra.mxu0 %v1304
    %v1322 = vpop.f32.mrf.mxu0
    %v1323 = vadd.f32 %v167, %v1322
    %1324 = vdwg.mxu0
    %1325 = vmatpush.msra.mxu0 %v160
    %1326 = vmatpush.msra.mxu0 %v156
    %1327 = vmatpush.msra.mxu0 %v152
    %1328 = vmatpush.msra.mxu0 %v148
    %1329 = vmatpush.msra.mxu0 %v144
    %1330 = vmatpush.msra.mxu0 %v140
    %1331 = vmatpush.msra.mxu0 %v136
    %1332 = vmatpush.msra.mxu0 %v132
    %1333 = vmatpush.msra.mxu0 %v128
    %1334 = vmatpush.msra.mxu0 %v124
    %1335 = vmatpush.msra.mxu0 %v120
    %1336 = vmatpush.msra.mxu0 %v116
    %1337 = vmatpush.msra.mxu0 %v112
    %1338 = vmatpush.msra.mxu0 %v108
    %1339 = vmatpush.msra.mxu0 %v104
    %1340 = vmatpush.msra.mxu0 %v100
    %1341 = vmatmul.f32.gmra.mxu0 %v1301
    %v1342 = vpop.f32.mrf.mxu0
    %v1343 = vadd.f32 %v1323, %v1342
    %1344 = vdwg.mxu0
    %1345 = vmatpush.msra.mxu0 %v97
    %1346 = vmatpush.msra.mxu0 %v93
    %1347 = vmatpush.msra.mxu0 %v89
    %1348 = vmatpush.msra.mxu0 %v85
    %1349 = vmatpush.msra.mxu0 %v81
    %1350 = vmatpush.msra.mxu0 %v77
    %1351 = vmatpush.msra.mxu0 %v73
    %1352 = vmatpush.msra.mxu0 %v69
    %1353 = vmatpush.msra.mxu0 %v65
    %1354 = vmatpush.msra.mxu0 %v61
    %1355 = vmatpush.msra.mxu0 %v57
    %1356 = vmatpush.msra.mxu0 %v53
    %1357 = vmatpush.msra.mxu0 %v49
    %1358 = vmatpush.msra.mxu0 %v45
    %1359 = vmatpush.msra.mxu0 %v41
    %1360 = vmatpush.msra.mxu0 %v37
    %1361 = vmatmul.f32.gmra.mxu0 %v1304
    %v1362 = vpop.f32.mrf.mxu0
    %v1363 = vadd.f32 %v168, %v1362
    %1364 = vdwg.mxu0
    %1365 = vmatpush.msra.mxu0 %v161
    %1366 = vmatpush.msra.mxu0 %v157
    %1367 = vmatpush.msra.mxu0 %v153
    %1368 = vmatpush.msra.mxu0 %v149
    %1369 = vmatpush.msra.mxu0 %v145
    %1370 = vmatpush.msra.mxu0 %v141
    %1371 = vmatpush.msra.mxu0 %v137
    %1372 = vmatpush.msra.mxu0 %v133
    %1373 = vmatpush.msra.mxu0 %v129
    %1374 = vmatpush.msra.mxu0 %v125
    %1375 = vmatpush.msra.mxu0 %v121
    %1376 = vmatpush.msra.mxu0 %v117
    %1377 = vmatpush.msra.mxu0 %v113
    %1378 = vmatpush.msra.mxu0 %v109
    %1379 = vmatpush.msra.mxu0 %v105
    %1380 = vmatpush.msra.mxu0 %v101
    %1381 = vmatmul.f32.gmra.mxu0 %v1301
    %v1382 = vpop.f32.mrf.mxu0
    %v1383 = vadd.f32 %v1363, %v1382
    %1384 = vdwg.mxu0
    %1385 = vmatpush.msra.mxu0 %v98
    %1386 = vmatpush.msra.mxu0 %v94
    %1387 = vmatpush.msra.mxu0 %v90
    %1388 = vmatpush.msra.mxu0 %v86
    %1389 = vmatpush.msra.mxu0 %v82
    %1390 = vmatpush.msra.mxu0 %v78
    %1391 = vmatpush.msra.mxu0 %v74
    %1392 = vmatpush.msra.mxu0 %v70
    %1393 = vmatpush.msra.mxu0 %v66
    %1394 = vmatpush.msra.mxu0 %v62
    %1395 = vmatpush.msra.mxu0 %v58
    %1396 = vmatpush.msra.mxu0 %v54
    %1397 = vmatpush.msra.mxu0 %v50
    %1398 = vmatpush.msra.mxu0 %v46
    %1399 = vmatpush.msra.mxu0 %v42
    %1400 = vmatpush.msra.mxu0 %v38
    %1401 = vmatmul.f32.gmra.mxu0 %v1304
    %v1402 = vpop.f32.mrf.mxu0
    %v1403 = vadd.f32 %v169, %v1402
    %1404 = vdwg.mxu0
    %1405 = vmatpush.msra.mxu0 %v162
    %1406 = vmatpush.msra.mxu0 %v158
    %1407 = vmatpush.msra.mxu0 %v154
    %1408 = vmatpush.msra.mxu0 %v150
    %1409 = vmatpush.msra.mxu0 %v146
    %1410 = vmatpush.msra.mxu0 %v142
    %1411 = vmatpush.msra.mxu0 %v138
    %1412 = vmatpush.msra.mxu0 %v134
    %1413 = vmatpush.msra.mxu0 %v130
    %1414 = vmatpush.msra.mxu0 %v126
    %1415 = vmatpush.msra.mxu0 %v122
    %1416 = vmatpush.msra.mxu0 %v118
    %1417 = vmatpush.msra.mxu0 %v114
    %1418 = vmatpush.msra.mxu0 %v110
    %1419 = vmatpush.msra.mxu0 %v106
    %1420 = vmatpush.msra.mxu0 %v102
    %1421 = vmatmul.f32.gmra.mxu0 %v1301
    %v1422 = vpop.f32.mrf.mxu0
    %v1423 = vadd.f32 %v1403, %v1422
    %1424 = vdwg.mxu0
    %1425 = vmatpush.msra.mxu0 %v99
    %1426 = vmatpush.msra.mxu0 %v95
    %1427 = vmatpush.msra.mxu0 %v91
    %1428 = vmatpush.msra.mxu0 %v87
    %1429 = vmatpush.msra.mxu0 %v83
    %1430 = vmatpush.msra.mxu0 %v79
    %1431 = vmatpush.msra.mxu0 %v75
    %1432 = vmatpush.msra.mxu0 %v71
    %1433 = vmatpush.msra.mxu0 %v67
    %1434 = vmatpush.msra.mxu0 %v63
    %1435 = vmatpush.msra.mxu0 %v59
    %1436 = vmatpush.msra.mxu0 %v55
    %1437 = vmatpush.msra.mxu0 %v51
    %1438 = vmatpush.msra.mxu0 %v47
    %1439 = vmatpush.msra.mxu0 %v43
    %1440 = vmatpush.msra.mxu0 %v39
    %1441 = vmatmul.f32.gmra.mxu0 %v1304
    %v1442 = vpop.f32.mrf.mxu0
    %v1443 = vadd.f32 %v170, %v1442
    %1444 = vdwg.mxu0
    %1445 = vmatpush.msra.mxu0 %v163
    %1446 = vmatpush.msra.mxu0 %v159
    %1447 = vmatpush.msra.mxu0 %v155
    %1448 = vmatpush.msra.mxu0 %v151
    %1449 = vmatpush.msra.mxu0 %v147
    %1450 = vmatpush.msra.mxu0 %v143
    %1451 = vmatpush.msra.mxu0 %v139
    %1452 = vmatpush.msra.mxu0 %v135
    %1453 = vmatpush.msra.mxu0 %v131
    %1454 = vmatpush.msra.mxu0 %v127
    %1455 = vmatpush.msra.mxu0 %v123
    %1456 = vmatpush.msra.mxu0 %v119
    %1457 = vmatpush.msra.mxu0 %v115
    %1458 = vmatpush.msra.mxu0 %v111
    %1459 = vmatpush.msra.mxu0 %v107
    %1460 = vmatpush.msra.mxu0 %v103
    %1461 = vmatmul.f32.gmra.mxu0 %v1301
    %v1462 = vpop.f32.mrf.mxu0
    %v1463 = vadd.f32 %v1443, %v1462
    %1464 = vdwg.mxu0
    %v1465 = vxor.u32 %v1343, 2147483648
    %v1466 = vmul.f32 %v1465, 1.442695
    %v1467 = vpow.pop %v1466
    %v1468 = vadd.f32 %v1467, 1.0
    %v1469 = vrcp.pop %v1468
    %v1470 = vmul.f32 %v1468, %v1469
    %v1471 = vsub.f32 1.0, %v1470
    %v1472 = vmul.f32 %v1469, %v1471
    %v1473 = vadd.f32 %v1469, %v1472
    %vm1474 = vweird.f32 %v1468
    %vm1475 = vweird.f32 %v1469
    %vm1476 = vmor %vm1474, %vm1475
    %v1477 = vsel %vm1476, %v1469, %v1473
    %v1478 = vand.u32 2147483647, %v1468
    %vm1479 = vcmp.eq.f32.partialorder %v1478, 8.507059e+37
    %v1480 = vand.u32 %v1468, 2147483648
    %v1481 = vor.u32 1.1754944e-38, %v1480
    %v1482 = vsel %vm1479, %v1481, %v1477
    %v1483 = vmul.f32 1.0, %v1482
    %v1484 = vxor.u32 %v1383, 2147483648
    %v1485 = vmul.f32 %v1484, 1.442695
    %v1486 = vpow.pop %v1485
    %v1487 = vadd.f32 %v1486, 1.0
    %v1488 = vrcp.pop %v1487
    %v1489 = vmul.f32 %v1487, %v1488
    %v1490 = vsub.f32 1.0, %v1489
    %v1491 = vmul.f32 %v1488, %v1490
    %v1492 = vadd.f32 %v1488, %v1491
    %vm1493 = vweird.f32 %v1487
    %vm1494 = vweird.f32 %v1488
    %vm1495 = vmor %vm1493, %vm1494
    %v1496 = vsel %vm1495, %v1488, %v1492
    %v1497 = vand.u32 2147483647, %v1487
    %vm1498 = vcmp.eq.f32.partialorder %v1497, 8.507059e+37
    %v1499 = vand.u32 %v1487, 2147483648
    %v1500 = vor.u32 1.1754944e-38, %v1499
    %v1501 = vsel %vm1498, %v1500, %v1496
    %v1502 = vmul.f32 1.0, %v1501
    %v1503 = vtanh.pop %v1423
    %v1504 = vxor.u32 %v1463, 2147483648
    %v1505 = vmul.f32 %v1504, 1.442695
    %v1506 = vpow.pop %v1505
    %v1507 = vadd.f32 %v1506, 1.0
    %v1508 = vrcp.pop %v1507
    %v1509 = vmul.f32 %v1507, %v1508
    %v1510 = vsub.f32 1.0, %v1509
    %v1511 = vmul.f32 %v1508, %v1510
    %v1512 = vadd.f32 %v1508, %v1511
    %vm1513 = vweird.f32 %v1507
    %vm1514 = vweird.f32 %v1508
    %vm1515 = vmor %vm1513, %vm1514
    %v1516 = vsel %vm1515, %v1508, %v1512
    %v1517 = vand.u32 2147483647, %v1507
    %vm1518 = vcmp.eq.f32.partialorder %v1517, 8.507059e+37
    %v1519 = vand.u32 %v1507, 2147483648
    %v1520 = vor.u32 1.1754944e-38, %v1519
    %v1521 = vsel %vm1518, %v1520, %v1516
    %v1522 = vmul.f32 1.0, %v1521
    %v1523 = vmul.f32 %v1502, %v1299
    %v1524 = vmul.f32 %v1483, %v1503
    %v1525 = vadd.f32 %v1523, %v1524
    %v1526 = vtanh.pop %v1525
    %v1527 = vmul.f32 %v1522, %v1526
    %1528 = vst [vmem:[#allocation2 + $0xa] sm:$0x3] %v1527
    %s1529 = scalar_lea.vmem %s0, 12
    %v1530 = vld [vmem:[%s1529] sm:$0x3]
    %1531 = vmatpush.msra.mxu0 %v96
    %1532 = vmatpush.msra.mxu0 %v92
    %1533 = vmatpush.msra.mxu0 %v88
    %1534 = vmatpush.msra.mxu0 %v84
    %1535 = vmatpush.msra.mxu0 %v80
    %1536 = vmatpush.msra.mxu0 %v76
    %1537 = vmatpush.msra.mxu0 %v72
    %1538 = vmatpush.msra.mxu0 %v68
    %1539 = vmatpush.msra.mxu0 %v64
    %1540 = vmatpush.msra.mxu0 %v60
    %1541 = vmatpush.msra.mxu0 %v56
    %1542 = vmatpush.msra.mxu0 %v52
    %1543 = vmatpush.msra.mxu0 %v48
    %1544 = vmatpush.msra.mxu0 %v44
    %1545 = vmatpush.msra.mxu0 %v40
    %1546 = vmatpush.msra.mxu0 %v36
    %1547 = vmatmul.f32.gmra.mxu0 %v1530
    %v1548 = vpop.f32.mrf.mxu0
    %v1549 = vadd.f32 %v167, %v1548
    %1550 = vdwg.mxu0
    %1551 = vmatpush.msra.mxu0 %v160
    %1552 = vmatpush.msra.mxu0 %v156
    %1553 = vmatpush.msra.mxu0 %v152
    %1554 = vmatpush.msra.mxu0 %v148
    %1555 = vmatpush.msra.mxu0 %v144
    %1556 = vmatpush.msra.mxu0 %v140
    %1557 = vmatpush.msra.mxu0 %v136
    %1558 = vmatpush.msra.mxu0 %v132
    %1559 = vmatpush.msra.mxu0 %v128
    %1560 = vmatpush.msra.mxu0 %v124
    %1561 = vmatpush.msra.mxu0 %v120
    %1562 = vmatpush.msra.mxu0 %v116
    %1563 = vmatpush.msra.mxu0 %v112
    %1564 = vmatpush.msra.mxu0 %v108
    %1565 = vmatpush.msra.mxu0 %v104
    %1566 = vmatpush.msra.mxu0 %v100
    %1567 = vmatmul.f32.gmra.mxu0 %v1527
    %v1568 = vpop.f32.mrf.mxu0
    %v1569 = vadd.f32 %v1549, %v1568
    %1570 = vdwg.mxu0
    %1571 = vmatpush.msra.mxu0 %v97
    %1572 = vmatpush.msra.mxu0 %v93
    %1573 = vmatpush.msra.mxu0 %v89
    %1574 = vmatpush.msra.mxu0 %v85
    %1575 = vmatpush.msra.mxu0 %v81
    %1576 = vmatpush.msra.mxu0 %v77
    %1577 = vmatpush.msra.mxu0 %v73
    %1578 = vmatpush.msra.mxu0 %v69
    %1579 = vmatpush.msra.mxu0 %v65
    %1580 = vmatpush.msra.mxu0 %v61
    %1581 = vmatpush.msra.mxu0 %v57
    %1582 = vmatpush.msra.mxu0 %v53
    %1583 = vmatpush.msra.mxu0 %v49
    %1584 = vmatpush.msra.mxu0 %v45
    %1585 = vmatpush.msra.mxu0 %v41
    %1586 = vmatpush.msra.mxu0 %v37
    %1587 = vmatmul.f32.gmra.mxu0 %v1530
    %v1588 = vpop.f32.mrf.mxu0
    %v1589 = vadd.f32 %v168, %v1588
    %1590 = vdwg.mxu0
    %1591 = vmatpush.msra.mxu0 %v161
    %1592 = vmatpush.msra.mxu0 %v157
    %1593 = vmatpush.msra.mxu0 %v153
    %1594 = vmatpush.msra.mxu0 %v149
    %1595 = vmatpush.msra.mxu0 %v145
    %1596 = vmatpush.msra.mxu0 %v141
    %1597 = vmatpush.msra.mxu0 %v137
    %1598 = vmatpush.msra.mxu0 %v133
    %1599 = vmatpush.msra.mxu0 %v129
    %1600 = vmatpush.msra.mxu0 %v125
    %1601 = vmatpush.msra.mxu0 %v121
    %1602 = vmatpush.msra.mxu0 %v117
    %1603 = vmatpush.msra.mxu0 %v113
    %1604 = vmatpush.msra.mxu0 %v109
    %1605 = vmatpush.msra.mxu0 %v105
    %1606 = vmatpush.msra.mxu0 %v101
    %1607 = vmatmul.f32.gmra.mxu0 %v1527
    %v1608 = vpop.f32.mrf.mxu0
    %v1609 = vadd.f32 %v1589, %v1608
    %1610 = vdwg.mxu0
    %1611 = vmatpush.msra.mxu0 %v98
    %1612 = vmatpush.msra.mxu0 %v94
    %1613 = vmatpush.msra.mxu0 %v90
    %1614 = vmatpush.msra.mxu0 %v86
    %1615 = vmatpush.msra.mxu0 %v82
    %1616 = vmatpush.msra.mxu0 %v78
    %1617 = vmatpush.msra.mxu0 %v74
    %1618 = vmatpush.msra.mxu0 %v70
    %1619 = vmatpush.msra.mxu0 %v66
    %1620 = vmatpush.msra.mxu0 %v62
    %1621 = vmatpush.msra.mxu0 %v58
    %1622 = vmatpush.msra.mxu0 %v54
    %1623 = vmatpush.msra.mxu0 %v50
    %1624 = vmatpush.msra.mxu0 %v46
    %1625 = vmatpush.msra.mxu0 %v42
    %1626 = vmatpush.msra.mxu0 %v38
    %1627 = vmatmul.f32.gmra.mxu0 %v1530
    %v1628 = vpop.f32.mrf.mxu0
    %v1629 = vadd.f32 %v169, %v1628
    %1630 = vdwg.mxu0
    %1631 = vmatpush.msra.mxu0 %v162
    %1632 = vmatpush.msra.mxu0 %v158
    %1633 = vmatpush.msra.mxu0 %v154
    %1634 = vmatpush.msra.mxu0 %v150
    %1635 = vmatpush.msra.mxu0 %v146
    %1636 = vmatpush.msra.mxu0 %v142
    %1637 = vmatpush.msra.mxu0 %v138
    %1638 = vmatpush.msra.mxu0 %v134
    %1639 = vmatpush.msra.mxu0 %v130
    %1640 = vmatpush.msra.mxu0 %v126
    %1641 = vmatpush.msra.mxu0 %v122
    %1642 = vmatpush.msra.mxu0 %v118
    %1643 = vmatpush.msra.mxu0 %v114
    %1644 = vmatpush.msra.mxu0 %v110
    %1645 = vmatpush.msra.mxu0 %v106
    %1646 = vmatpush.msra.mxu0 %v102
    %1647 = vmatmul.f32.gmra.mxu0 %v1527
    %v1648 = vpop.f32.mrf.mxu0
    %v1649 = vadd.f32 %v1629, %v1648
    %1650 = vdwg.mxu0
    %1651 = vmatpush.msra.mxu0 %v99
    %1652 = vmatpush.msra.mxu0 %v95
    %1653 = vmatpush.msra.mxu0 %v91
    %1654 = vmatpush.msra.mxu0 %v87
    %1655 = vmatpush.msra.mxu0 %v83
    %1656 = vmatpush.msra.mxu0 %v79
    %1657 = vmatpush.msra.mxu0 %v75
    %1658 = vmatpush.msra.mxu0 %v71
    %1659 = vmatpush.msra.mxu0 %v67
    %1660 = vmatpush.msra.mxu0 %v63
    %1661 = vmatpush.msra.mxu0 %v59
    %1662 = vmatpush.msra.mxu0 %v55
    %1663 = vmatpush.msra.mxu0 %v51
    %1664 = vmatpush.msra.mxu0 %v47
    %1665 = vmatpush.msra.mxu0 %v43
    %1666 = vmatpush.msra.mxu0 %v39
    %1667 = vmatmul.f32.gmra.mxu0 %v1530
    %v1668 = vpop.f32.mrf.mxu0
    %v1669 = vadd.f32 %v170, %v1668
    %1670 = vdwg.mxu0
    %1671 = vmatpush.msra.mxu0 %v163
    %1672 = vmatpush.msra.mxu0 %v159
    %1673 = vmatpush.msra.mxu0 %v155
    %1674 = vmatpush.msra.mxu0 %v151
    %1675 = vmatpush.msra.mxu0 %v147
    %1676 = vmatpush.msra.mxu0 %v143
    %1677 = vmatpush.msra.mxu0 %v139
    %1678 = vmatpush.msra.mxu0 %v135
    %1679 = vmatpush.msra.mxu0 %v131
    %1680 = vmatpush.msra.mxu0 %v127
    %1681 = vmatpush.msra.mxu0 %v123
    %1682 = vmatpush.msra.mxu0 %v119
    %1683 = vmatpush.msra.mxu0 %v115
    %1684 = vmatpush.msra.mxu0 %v111
    %1685 = vmatpush.msra.mxu0 %v107
    %1686 = vmatpush.msra.mxu0 %v103
    %1687 = vmatmul.f32.gmra.mxu0 %v1527
    %v1688 = vpop.f32.mrf.mxu0
    %v1689 = vadd.f32 %v1669, %v1688
    %1690 = vdwg.mxu0
    %v1691 = vxor.u32 %v1569, 2147483648
    %v1692 = vmul.f32 %v1691, 1.442695
    %v1693 = vpow.pop %v1692
    %v1694 = vadd.f32 %v1693, 1.0
    %v1695 = vrcp.pop %v1694
    %v1696 = vmul.f32 %v1694, %v1695
    %v1697 = vsub.f32 1.0, %v1696
    %v1698 = vmul.f32 %v1695, %v1697
    %v1699 = vadd.f32 %v1695, %v1698
    %vm1700 = vweird.f32 %v1694
    %vm1701 = vweird.f32 %v1695
    %vm1702 = vmor %vm1700, %vm1701
    %v1703 = vsel %vm1702, %v1695, %v1699
    %v1704 = vand.u32 2147483647, %v1694
    %vm1705 = vcmp.eq.f32.partialorder %v1704, 8.507059e+37
    %v1706 = vand.u32 %v1694, 2147483648
    %v1707 = vor.u32 1.1754944e-38, %v1706
    %v1708 = vsel %vm1705, %v1707, %v1703
    %v1709 = vmul.f32 1.0, %v1708
    %v1710 = vxor.u32 %v1609, 2147483648
    %v1711 = vmul.f32 %v1710, 1.442695
    %v1712 = vpow.pop %v1711
    %v1713 = vadd.f32 %v1712, 1.0
    %v1714 = vrcp.pop %v1713
    %v1715 = vmul.f32 %v1713, %v1714
    %v1716 = vsub.f32 1.0, %v1715
    %v1717 = vmul.f32 %v1714, %v1716
    %v1718 = vadd.f32 %v1714, %v1717
    %vm1719 = vweird.f32 %v1713
    %vm1720 = vweird.f32 %v1714
    %vm1721 = vmor %vm1719, %vm1720
    %v1722 = vsel %vm1721, %v1714, %v1718
    %v1723 = vand.u32 2147483647, %v1713
    %vm1724 = vcmp.eq.f32.partialorder %v1723, 8.507059e+37
    %v1725 = vand.u32 %v1713, 2147483648
    %v1726 = vor.u32 1.1754944e-38, %v1725
    %v1727 = vsel %vm1724, %v1726, %v1722
    %v1728 = vmul.f32 1.0, %v1727
    %v1729 = vtanh.pop %v1649
    %v1730 = vxor.u32 %v1689, 2147483648
    %v1731 = vmul.f32 %v1730, 1.442695
    %v1732 = vpow.pop %v1731
    %v1733 = vadd.f32 %v1732, 1.0
    %v1734 = vrcp.pop %v1733
    %v1735 = vmul.f32 %v1733, %v1734
    %v1736 = vsub.f32 1.0, %v1735
    %v1737 = vmul.f32 %v1734, %v1736
    %v1738 = vadd.f32 %v1734, %v1737
    %vm1739 = vweird.f32 %v1733
    %vm1740 = vweird.f32 %v1734
    %vm1741 = vmor %vm1739, %vm1740
    %v1742 = vsel %vm1741, %v1734, %v1738
    %v1743 = vand.u32 2147483647, %v1733
    %vm1744 = vcmp.eq.f32.partialorder %v1743, 8.507059e+37
    %v1745 = vand.u32 %v1733, 2147483648
    %v1746 = vor.u32 1.1754944e-38, %v1745
    %v1747 = vsel %vm1744, %v1746, %v1742
    %v1748 = vmul.f32 1.0, %v1747
    %v1749 = vmul.f32 %v1728, %v1525
    %v1750 = vmul.f32 %v1709, %v1729
    %v1751 = vadd.f32 %v1749, %v1750
    %v1752 = vtanh.pop %v1751
    %v1753 = vmul.f32 %v1748, %v1752
    %1754 = vst [vmem:[#allocation2 + $0xc] sm:$0x3] %v1753
    %s1755 = scalar_lea.vmem %s0, 14
    %v1756 = vld [vmem:[%s1755] sm:$0x3]
    %1757 = vmatpush.msra.mxu0 %v96
    %1758 = vmatpush.msra.mxu0 %v92
    %1759 = vmatpush.msra.mxu0 %v88
    %1760 = vmatpush.msra.mxu0 %v84
    %1761 = vmatpush.msra.mxu0 %v80
    %1762 = vmatpush.msra.mxu0 %v76
    %1763 = vmatpush.msra.mxu0 %v72
    %1764 = vmatpush.msra.mxu0 %v68
    %1765 = vmatpush.msra.mxu0 %v64
    %1766 = vmatpush.msra.mxu0 %v60
    %1767 = vmatpush.msra.mxu0 %v56
    %1768 = vmatpush.msra.mxu0 %v52
    %1769 = vmatpush.msra.mxu0 %v48
    %1770 = vmatpush.msra.mxu0 %v44
    %1771 = vmatpush.msra.mxu0 %v40
    %1772 = vmatpush.msra.mxu0 %v36
    %1773 = vmatmul.f32.gmra.mxu0 %v1756
    %v1774 = vpop.f32.mrf.mxu0
    %v1775 = vadd.f32 %v167, %v1774
    %1776 = vdwg.mxu0
    %1777 = vmatpush.msra.mxu0 %v160
    %1778 = vmatpush.msra.mxu0 %v156
    %1779 = vmatpush.msra.mxu0 %v152
    %1780 = vmatpush.msra.mxu0 %v148
    %1781 = vmatpush.msra.mxu0 %v144
    %1782 = vmatpush.msra.mxu0 %v140
    %1783 = vmatpush.msra.mxu0 %v136
    %1784 = vmatpush.msra.mxu0 %v132
    %1785 = vmatpush.msra.mxu0 %v128
    %1786 = vmatpush.msra.mxu0 %v124
    %1787 = vmatpush.msra.mxu0 %v120
    %1788 = vmatpush.msra.mxu0 %v116
    %1789 = vmatpush.msra.mxu0 %v112
    %1790 = vmatpush.msra.mxu0 %v108
    %1791 = vmatpush.msra.mxu0 %v104
    %1792 = vmatpush.msra.mxu0 %v100
    %1793 = vmatmul.f32.gmra.mxu0 %v1753
    %v1794 = vpop.f32.mrf.mxu0
    %v1795 = vadd.f32 %v1775, %v1794
    %1796 = vdwg.mxu0
    %1797 = vmatpush.msra.mxu0 %v97
    %1798 = vmatpush.msra.mxu0 %v93
    %1799 = vmatpush.msra.mxu0 %v89
    %1800 = vmatpush.msra.mxu0 %v85
    %1801 = vmatpush.msra.mxu0 %v81
    %1802 = vmatpush.msra.mxu0 %v77
    %1803 = vmatpush.msra.mxu0 %v73
    %1804 = vmatpush.msra.mxu0 %v69
    %1805 = vmatpush.msra.mxu0 %v65
    %1806 = vmatpush.msra.mxu0 %v61
    %1807 = vmatpush.msra.mxu0 %v57
    %1808 = vmatpush.msra.mxu0 %v53
    %1809 = vmatpush.msra.mxu0 %v49
    %1810 = vmatpush.msra.mxu0 %v45
    %1811 = vmatpush.msra.mxu0 %v41
    %1812 = vmatpush.msra.mxu0 %v37
    %1813 = vmatmul.f32.gmra.mxu0 %v1756
    %v1814 = vpop.f32.mrf.mxu0
    %v1815 = vadd.f32 %v168, %v1814
    %1816 = vdwg.mxu0
    %1817 = vmatpush.msra.mxu0 %v161
    %1818 = vmatpush.msra.mxu0 %v157
    %1819 = vmatpush.msra.mxu0 %v153
    %1820 = vmatpush.msra.mxu0 %v149
    %1821 = vmatpush.msra.mxu0 %v145
    %1822 = vmatpush.msra.mxu0 %v141
    %1823 = vmatpush.msra.mxu0 %v137
    %1824 = vmatpush.msra.mxu0 %v133
    %1825 = vmatpush.msra.mxu0 %v129
    %1826 = vmatpush.msra.mxu0 %v125
    %1827 = vmatpush.msra.mxu0 %v121
    %1828 = vmatpush.msra.mxu0 %v117
    %1829 = vmatpush.msra.mxu0 %v113
    %1830 = vmatpush.msra.mxu0 %v109
    %1831 = vmatpush.msra.mxu0 %v105
    %1832 = vmatpush.msra.mxu0 %v101
    %1833 = vmatmul.f32.gmra.mxu0 %v1753
    %v1834 = vpop.f32.mrf.mxu0
    %v1835 = vadd.f32 %v1815, %v1834
    %1836 = vdwg.mxu0
    %1837 = vmatpush.msra.mxu0 %v98
    %1838 = vmatpush.msra.mxu0 %v94
    %1839 = vmatpush.msra.mxu0 %v90
    %1840 = vmatpush.msra.mxu0 %v86
    %1841 = vmatpush.msra.mxu0 %v82
    %1842 = vmatpush.msra.mxu0 %v78
    %1843 = vmatpush.msra.mxu0 %v74
    %1844 = vmatpush.msra.mxu0 %v70
    %1845 = vmatpush.msra.mxu0 %v66
    %1846 = vmatpush.msra.mxu0 %v62
    %1847 = vmatpush.msra.mxu0 %v58
    %1848 = vmatpush.msra.mxu0 %v54
    %1849 = vmatpush.msra.mxu0 %v50
    %1850 = vmatpush.msra.mxu0 %v46
    %1851 = vmatpush.msra.mxu0 %v42
    %1852 = vmatpush.msra.mxu0 %v38
    %1853 = vmatmul.f32.gmra.mxu0 %v1756
    %v1854 = vpop.f32.mrf.mxu0
    %v1855 = vadd.f32 %v169, %v1854
    %1856 = vdwg.mxu0
    %1857 = vmatpush.msra.mxu0 %v162
    %1858 = vmatpush.msra.mxu0 %v158
    %1859 = vmatpush.msra.mxu0 %v154
    %1860 = vmatpush.msra.mxu0 %v150
    %1861 = vmatpush.msra.mxu0 %v146
    %1862 = vmatpush.msra.mxu0 %v142
    %1863 = vmatpush.msra.mxu0 %v138
    %1864 = vmatpush.msra.mxu0 %v134
    %1865 = vmatpush.msra.mxu0 %v130
    %1866 = vmatpush.msra.mxu0 %v126
    %1867 = vmatpush.msra.mxu0 %v122
    %1868 = vmatpush.msra.mxu0 %v118
    %1869 = vmatpush.msra.mxu0 %v114
    %1870 = vmatpush.msra.mxu0 %v110
    %1871 = vmatpush.msra.mxu0 %v106
    %1872 = vmatpush.msra.mxu0 %v102
    %1873 = vmatmul.f32.gmra.mxu0 %v1753
    %v1874 = vpop.f32.mrf.mxu0
    %v1875 = vadd.f32 %v1855, %v1874
    %1876 = vdwg.mxu0
    %1877 = vmatpush.msra.mxu0 %v99
    %1878 = vmatpush.msra.mxu0 %v95
    %1879 = vmatpush.msra.mxu0 %v91
    %1880 = vmatpush.msra.mxu0 %v87
    %1881 = vmatpush.msra.mxu0 %v83
    %1882 = vmatpush.msra.mxu0 %v79
    %1883 = vmatpush.msra.mxu0 %v75
    %1884 = vmatpush.msra.mxu0 %v71
    %1885 = vmatpush.msra.mxu0 %v67
    %1886 = vmatpush.msra.mxu0 %v63
    %1887 = vmatpush.msra.mxu0 %v59
    %1888 = vmatpush.msra.mxu0 %v55
    %1889 = vmatpush.msra.mxu0 %v51
    %1890 = vmatpush.msra.mxu0 %v47
    %1891 = vmatpush.msra.mxu0 %v43
    %1892 = vmatpush.msra.mxu0 %v39
    %1893 = vmatmul.f32.gmra.mxu0 %v1756
    %v1894 = vpop.f32.mrf.mxu0
    %v1895 = vadd.f32 %v170, %v1894
    %1896 = vdwg.mxu0
    %1897 = vmatpush.msra.mxu0 %v163
    %1898 = vmatpush.msra.mxu0 %v159
    %1899 = vmatpush.msra.mxu0 %v155
    %1900 = vmatpush.msra.mxu0 %v151
    %1901 = vmatpush.msra.mxu0 %v147
    %1902 = vmatpush.msra.mxu0 %v143
    %1903 = vmatpush.msra.mxu0 %v139
    %1904 = vmatpush.msra.mxu0 %v135
    %1905 = vmatpush.msra.mxu0 %v131
    %1906 = vmatpush.msra.mxu0 %v127
    %1907 = vmatpush.msra.mxu0 %v123
    %1908 = vmatpush.msra.mxu0 %v119
    %1909 = vmatpush.msra.mxu0 %v115
    %1910 = vmatpush.msra.mxu0 %v111
    %1911 = vmatpush.msra.mxu0 %v107
    %1912 = vmatpush.msra.mxu0 %v103
    %1913 = vmatmul.f32.gmra.mxu0 %v1753
    %v1914 = vpop.f32.mrf.mxu0
    %v1915 = vadd.f32 %v1895, %v1914
    %1916 = vdwg.mxu0
    %v1917 = vxor.u32 %v1795, 2147483648
    %v1918 = vmul.f32 %v1917, 1.442695
    %v1919 = vpow.pop %v1918
    %v1920 = vadd.f32 %v1919, 1.0
    %v1921 = vrcp.pop %v1920
    %v1922 = vmul.f32 %v1920, %v1921
    %v1923 = vsub.f32 1.0, %v1922
    %v1924 = vmul.f32 %v1921, %v1923
    %v1925 = vadd.f32 %v1921, %v1924
    %vm1926 = vweird.f32 %v1920
    %vm1927 = vweird.f32 %v1921
    %vm1928 = vmor %vm1926, %vm1927
    %v1929 = vsel %vm1928, %v1921, %v1925
    %v1930 = vand.u32 2147483647, %v1920
    %vm1931 = vcmp.eq.f32.partialorder %v1930, 8.507059e+37
    %v1932 = vand.u32 %v1920, 2147483648
    %v1933 = vor.u32 1.1754944e-38, %v1932
    %v1934 = vsel %vm1931, %v1933, %v1929
    %v1935 = vmul.f32 1.0, %v1934
    %v1936 = vxor.u32 %v1835, 2147483648
    %v1937 = vmul.f32 %v1936, 1.442695
    %v1938 = vpow.pop %v1937
    %v1939 = vadd.f32 %v1938, 1.0
    %v1940 = vrcp.pop %v1939
    %v1941 = vmul.f32 %v1939, %v1940
    %v1942 = vsub.f32 1.0, %v1941
    %v1943 = vmul.f32 %v1940, %v1942
    %v1944 = vadd.f32 %v1940, %v1943
    %vm1945 = vweird.f32 %v1939
    %vm1946 = vweird.f32 %v1940
    %vm1947 = vmor %vm1945, %vm1946
    %v1948 = vsel %vm1947, %v1940, %v1944
    %v1949 = vand.u32 2147483647, %v1939
    %vm1950 = vcmp.eq.f32.partialorder %v1949, 8.507059e+37
    %v1951 = vand.u32 %v1939, 2147483648
    %v1952 = vor.u32 1.1754944e-38, %v1951
    %v1953 = vsel %vm1950, %v1952, %v1948
    %v1954 = vmul.f32 1.0, %v1953
    %v1955 = vtanh.pop %v1875
    %v1956 = vxor.u32 %v1915, 2147483648
    %v1957 = vmul.f32 %v1956, 1.442695
    %v1958 = vpow.pop %v1957
    %v1959 = vadd.f32 %v1958, 1.0
    %v1960 = vrcp.pop %v1959
    %v1961 = vmul.f32 %v1959, %v1960
    %v1962 = vsub.f32 1.0, %v1961
    %v1963 = vmul.f32 %v1960, %v1962
    %v1964 = vadd.f32 %v1960, %v1963
    %vm1965 = vweird.f32 %v1959
    %vm1966 = vweird.f32 %v1960
    %vm1967 = vmor %vm1965, %vm1966
    %v1968 = vsel %vm1967, %v1960, %v1964
    %v1969 = vand.u32 2147483647, %v1959
    %vm1970 = vcmp.eq.f32.partialorder %v1969, 8.507059e+37
    %v1971 = vand.u32 %v1959, 2147483648
    %v1972 = vor.u32 1.1754944e-38, %v1971
    %v1973 = vsel %vm1970, %v1972, %v1968
    %v1974 = vmul.f32 1.0, %v1973
    %v1975 = vmul.f32 %v1954, %v1751
    %v1976 = vmul.f32 %v1935, %v1955
    %v1977 = vadd.f32 %v1975, %v1976
    %v1978 = vtanh.pop %v1977
    %v1979 = vmul.f32 %v1974, %v1978
    %1980 = vst [vmem:[#allocation2 + $0xe] sm:$0x3] %v1979
    %v1981 = vld [vmem:[#allocation2] sm:$0xff]
    %v1982 = vld [vmem:[#allocation2 + $0x8] sm:$0xff]
    %v1983 = vld [vmem:[%s3] sm:$0xff]
    %v1984 = vld [vmem:[%s3 + $0x8] sm:$0xff]
    %v1985 = vld [vmem:[%s3 + $0x10] sm:$0xff]
    %v1986 = vld [vmem:[%s3 + $0x18] sm:$0xff]
    %v1987 = vld [vmem:[%s3 + $0x20] sm:$0xff]
    %v1988 = vld [vmem:[%s3 + $0x28] sm:$0xff]
    %v1989 = vld [vmem:[%s3 + $0x30] sm:$0xff]
    %v1990 = vld [vmem:[%s3 + $0x38] sm:$0xff]
    %v1991 = vld [vmem:[%s3 + $0x40] sm:$0xff]
    %v1992 = vld [vmem:[%s3 + $0x48] sm:$0xff]
    %v1993 = vld [vmem:[%s3 + $0x50] sm:$0xff]
    %v1994 = vld [vmem:[%s3 + $0x58] sm:$0xff]
    %v1995 = vld [vmem:[%s3 + $0x60] sm:$0xff]
    %v1996 = vld [vmem:[%s3 + $0x68] sm:$0xff]
    %v1997 = vld [vmem:[%s3 + $0x70] sm:$0xff]
    %v1998 = vld [vmem:[%s3 + $0x78] sm:$0xff]
    %v1999 = vld [vmem:[%s4] sm:$0x1]
    %v2001 = vperm.slane %v1999, 0
    %2003 = vmatpush.msra.mxu0 %v1998
    %2004 = vmatpush.msra.mxu0 %v1997
    %2005 = vmatpush.msra.mxu0 %v1996
    %2006 = vmatpush.msra.mxu0 %v1995
    %2007 = vmatpush.msra.mxu0 %v1994
    %2008 = vmatpush.msra.mxu0 %v1993
    %2009 = vmatpush.msra.mxu0 %v1992
    %2010 = vmatpush.msra.mxu0 %v1991
    %2011 = vmatpush.msra.mxu0 %v1990
    %2012 = vmatpush.msra.mxu0 %v1989
    %2013 = vmatpush.msra.mxu0 %v1988
    %2014 = vmatpush.msra.mxu0 %v1987
    %2015 = vmatpush.msra.mxu0 %v1986
    %2016 = vmatpush.msra.mxu0 %v1985
    %2017 = vmatpush.msra.mxu0 %v1984
    %2018 = vmatpush.msra.mxu0 %v1983
    %2019 = vmatmul.f32.gmra.mxu0 %v1981
    %v2020 = vpop.f32.mrf.mxu0
    %v2021 = vadd.f32 %v2001, %v2020
    %2022 = vmatmul.f32.gmra.mxu0 %v1982
    %v2023 = vpop.f32.mrf.mxu0
    %v2024 = vadd.f32 %v2001, %v2023
    %2025 = vdwg.mxu0
    %2026 = vst [vmem:[%s5] sm:$0xff] %v2021
    %2027 = vst [vmem:[%s5 + $0x8] sm:$0xff] %v2024
    // Predicated region
    $region26: #{char_rnn_forward.1} parent=1 // pred_check
      _
    $region27: #{char_rnn_forward.1} parent=1 // pred_check_branch
      %2029 = sbr.rel (0) target = $region29
    $region28: #{char_rnn_forward.1} parent=1 // pred_region
      _
    $region29: #{char_rnn_forward.1} parent=1 // pred_fallthru
      _
    // Predicated region
    $region30: #{char_rnn_forward.1} parent=1 // pred_check
      _
    $region31: #{char_rnn_forward.1} parent=1 // pred_check_branch
      %2031 = sbr.rel (0) target = $region33
    $region32: #{char_rnn_forward.1} parent=1 // pred_region
      _
    $region33: #{char_rnn_forward.1} parent=1 // pred_fallthru
      _
    %2032 = vsyncpa [#allocation4], 1

</llo_original>
